<compile_context>
chip_gen: v7x
topology: tpu7x:2x2x1
jax: 0.10.0
libtpu: 0.0.40
codegen_flags: <defaults>
</compile_context>

<pallas_src>
import jax
import jax.numpy as jnp
from jax import lax
from jax.experimental import pallas as pl
from jax.experimental.pallas import tpu as pltpu

BN_EPS = 1e-5
TILE_B = 512  # default max batch tile (overhead amortization; tiny VMEM footprint)


def _round_up(x, m):
    return ((x + m - 1) // m) * m


# --------------------------------------------------------------------------- #
# Kernel                                                                      #
# --------------------------------------------------------------------------- #
def mlp_kernel(x_ref,
               w1_ref, b1_ref,
               w2_ref, b2_ref,
               w3_ref, b3_ref,
               w4_ref, b4_ref,
               o_ref):
    """Fused 4-layer MLP on one batch tile.

    Weights are bf16 (MXU-native); accumulation, bias add, ReLU and abs are f32.
    Inference-mode BatchNorms were folded into the weights by the wrapper.
    """

    def layer(h, w_ref, b_ref):
        acc = jnp.dot(h.astype(jnp.bfloat16), w_ref[...],
                      preferred_element_type=jnp.float32)
        return jnp.maximum(acc + b_ref[...], 0.0)

    h = layer(x_ref[...], w1_ref, b1_ref)
    h = layer(h, w2_ref, b2_ref)
    h = layer(h, w3_ref, b3_ref)
    h = layer(h, w4_ref, b4_ref)
    o_ref[...] = jnp.abs(h)   # abs(ReLU(x)) == ReLU(x); kept for spec fidelity (free VPU op)


# --------------------------------------------------------------------------- #
# Wrapper                                                                     #
# --------------------------------------------------------------------------- #
def _fold_bn_into_next_linear(params):
    """Fold inference-mode BN (applied after ReLU, before the next Linear).

    next_linear(BN(r)) = r @ (scale[:,None] * W) + (shift @ W + b)
    with scale = gamma * rsqrt(var + eps), shift = beta - mean * scale.
    """
    (w1, b1, g1, bt1, m1, v1,
     w2, b2, g2, bt2, m2, v2,
     w3, b3, g3, bt3, m3, v3,
     w4, b4) = params

    def fold(w_next, b_next, g, bt, m, v):
        scale = g * lax.rsqrt(v + BN_EPS)        # [1, F]
        shift = bt - m * scale                   # [1, F]
        w_f = scale.reshape(-1, 1) * w_next
        b_f = b_next + shift @ w_next
        return w_f, b_f

    w2f, b2f = fold(w2, b2, g1, bt1, m1, v1)
    w3f, b3f = fold(w3, b3, g2, bt2, m2, v2)
    w4f, b4f = fold(w4, b4, g3, bt3, m3, v3)
    return (w1, b1, w2f, b2f, w3f, b3f, w4f, b4f)


def _pad_cols(a, new_cols):
    return a if a.shape[1] == new_cols else jnp.pad(a, ((0, 0), (0, new_cols - a.shape[1])))


def _pad_rows(a, new_rows):
    return a if a.shape[0] == new_rows else jnp.pad(a, ((0, new_rows - a.shape[0]), (0, 0)))


def trainable_mlp_forward(x, params, tile_b=TILE_B):
    """x: [B, in_dim] f32; params: PyTorch-style flat tuple (see init_params)."""
    w1, b1, w2, b2, w3, b3, w4, b4 = _fold_bn_into_next_linear(params)

    in_dim = w1.shape[0]
    out_dim = w4.shape[1]

    # Lane-align the 64-wide layer-3 hidden dim and the output dim to 128.
    # Zero padding -> bit-identical results (padded activations are ReLU(0)=0,
    # padded w4 rows are 0), but every matmul N/K dim and the output store slab
    # become full multiples of 128 lanes (unmasked vst, clean vreg layout).
    h3_dim = w3.shape[1]
    h3_pad = max(128, _round_up(h3_dim, 128))
    out_pad = max(128, _round_up(out_dim, 128))
    w3 = _pad_cols(w3, h3_pad)
    b3 = _pad_cols(b3, h3_pad)
    w4 = _pad_cols(_pad_rows(w4, h3_pad), out_pad)
    b4 = _pad_cols(b4, out_pad)

    # bf16 matmul operands (f32 accumulation inside the kernel); halves weight DMA.
    w1, w2, w3, w4 = (w.astype(jnp.bfloat16) for w in (w1, w2, w3, w4))

    # Adaptive batch tiling: keep tiles big (overhead amortization) while
    # minimizing padded rows.
    B = x.shape[0]
    n_tiles = pl.cdiv(B, tile_b)
    tile_b = _round_up(pl.cdiv(B, n_tiles), 8)       # sublane granule
    b_padded = n_tiles * tile_b
    if b_padded != B:
        x = jnp.pad(x, ((0, b_padded - B), (0, 0)))

    weights = (w1, b1, w2, b2, w3, b3, w4, b4)

    x_spec = pl.BlockSpec((tile_b, in_dim), lambda i: (i, 0))
    # Constant index_map -> weights DMA'd once, resident across the batch grid.
    weight_specs = [pl.BlockSpec(w.shape, lambda i: (0, 0)) for w in weights]
    out_spec = pl.BlockSpec((tile_b, out_pad), lambda i: (i, 0))

    # Advisory cost hint for the XLA scheduler around the custom call.
    dims = (in_dim, w1.shape[1], w2.shape[1], h3_pad, out_pad)
    flops = 2 * b_padded * sum(dims[i] * dims[i + 1] for i in range(4))
    bytes_accessed = (x.size * x.dtype.itemsize
                      + sum(w.size * w.dtype.itemsize for w in weights)
                      + b_padded * out_pad * 4)
    cost = pl.CostEstimate(flops=flops, transcendentals=0,
                           bytes_accessed=bytes_accessed)

    out = pl.pallas_call(
        mlp_kernel,
        grid=(n_tiles,),
        in_specs=[x_spec] + weight_specs,
        out_specs=out_spec,
        out_shape=jax.ShapeDtypeStruct((b_padded, out_pad), jnp.float32),
        compiler_params=pltpu.CompilerParams(
            dimension_semantics=("parallel",)),   # megacore split on v7x
        cost_estimate=cost,
    )(x, *weights)

    return out[:B, :out_dim]


# --------------------------------------------------------------------------- #
# Parameter init (mimics nn.Linear defaults; BN with identity running stats)  #
# --------------------------------------------------------------------------- #
def init_params(key, in_dim, output_size):
    dims = [in_dim, 128, 512, 64, output_size]
    keys = jax.random.split(key, 8)
    params = []
    for li in range(3):
        fan_in, fan_out = dims[li], dims[li + 1]
        bound = 1.0 / (fan_in ** 0.5)
        w = jax.random.uniform(keys[2 * li], (fan_in, fan_out), jnp.float32,
                               -bound, bound)
        b = jax.random.uniform(keys[2 * li + 1], (1, fan_out), jnp.float32,
                               -bound, bound)
        gamma = jnp.ones((1, fan_out), jnp.float32)
        beta = jnp.zeros((1, fan_out), jnp.float32)
        running_mean = jnp.zeros((1, fan_out), jnp.float32)
        running_var = jnp.ones((1, fan_out), jnp.float32)
        params += [w, b, gamma, beta, running_mean, running_var]
    fan_in, fan_out = dims[3], dims[4]
    bound = 1.0 / (fan_in ** 0.5)
    w4 = jax.random.uniform(keys[6], (fan_in, fan_out), jnp.float32, -bound, bound)
    b4 = jax.random.uniform(keys[7], (1, fan_out), jnp.float32, -bound, bound)
    params += [w4, b4]
    return tuple(params)


# --------------------------------------------------------------------------- #
# Main + references                                                           #
# --------------------------------------------------------------------------- #
if __name__ == "__main__":
    # synthetic CM() config
    num_wavelengths = 16
    in_dim = 2 * num_wavelengths                    # 32
    output_size = (6 + 2) * (7 + 1)                 # 64
    batch = 300

    key = jax.random.PRNGKey(0)
    k_x, k_p = jax.random.split(key)
    x = jax.random.normal(k_x, (batch, in_dim), jnp.float32)
    params = init_params(k_p, in_dim, output_size)

    # Reference 1: faithful PyTorch math in f32 (Linear -> ReLU -> BN) x3 -> Linear -> ReLU -> abs
    def ref_f32(x, p):
        (w1, b1, g1, bt1, m1, v1,
         w2, b2, g2, bt2, m2, v2,
         w3, b3, g3, bt3, m3, v3,
         w4, b4) = p

        def blk(h, w, b, g, bt, m, v):
            r = jnp.maximum(h @ w + b, 0.0)
            return (r - m) * lax.rsqrt(v + BN_EPS) * g + bt

        h = blk(x, w1, b1, g1, bt1, m1, v1)
        h = blk(h, w2, b2, g2, bt2, m2, v2)
        h = blk(h, w3, b3, g3, bt3, m3, v3)
        return jnp.abs(jnp.maximum(h @ w4 + b4, 0.0))

    # Reference 2: mirrors the kernel's folded / bf16-operand math exactly
    def ref_folded_bf16(x, p):
        w1, b1, w2, b2, w3, b3, w4, b4 = _fold_bn_into_next_linear(p)

        def layer(h, w, b):
            acc = jnp.dot(h.astype(jnp.bfloat16), w.astype(jnp.bfloat16),
                          preferred_element_type=jnp.float32)
            return jnp.maximum(acc + b, 0.0)

        h = layer(x, w1, b1)
        h = layer(h, w2, b2)
        h = layer(h, w3, b3)
        h = layer(h, w4, b4)
        return jnp.abs(h)

    expected_exact = ref_folded_bf16(x, params)
    expected_f32 = ref_f32(x, params)

    # Default (single re-balanced tile) and explicitly multi-tile grid.
    for tb in (TILE_B, 128):
        out = jax.block_until_ready(trainable_mlp_forward(x, params, tile_b=tb))
        assert out.shape == (batch, output_size)
        assert jnp.allclose(out, expected_exact, atol=2e-3, rtol=2e-3)
        assert jnp.allclose(out, expected_f32, atol=5e-2, rtol=2e-2)

    print("KERNEL_OK")
</pallas_src>

<mosaic_0001>
module attributes {stable_mosaic.version = 11 : i64} {
  func.func @mlp_kernel(%arg0: i32, %arg1: memref<304x32xf32, #tpu.memory_space<vmem>>, %arg2: memref<32x128xbf16, #tpu.memory_space<vmem>>, %arg3: memref<1x128xf32, #tpu.memory_space<vmem>>, %arg4: memref<128x512xbf16, #tpu.memory_space<vmem>>, %arg5: memref<1x512xf32, #tpu.memory_space<vmem>>, %arg6: memref<512x128xbf16, #tpu.memory_space<vmem>>, %arg7: memref<1x128xf32, #tpu.memory_space<vmem>>, %arg8: memref<128x128xbf16, #tpu.memory_space<vmem>>, %arg9: memref<1x128xf32, #tpu.memory_space<vmem>>, %arg10: memref<304x128xf32, #tpu.memory_space<vmem>>) attributes {dimension_semantics = [#tpu.dimension_semantics<parallel>], iteration_bounds = array<i64: 1>, scalar_prefetch = 0 : i64, scratch_operands = 0 : i64, tpu.core_type = #tpu.core_type<tc>, window_params = [{transform_indices = @transform_0, window_bounds = array<i64: 304, 32>}, {pipeline_mode = #tpu.pipeline_mode<synchronous>, transform_indices = @transform_1, window_bounds = array<i64: 32, 128>}, {pipeline_mode = #tpu.pipeline_mode<synchronous>, transform_indices = @transform_2, window_bounds = array<i64: 1, 128>}, {pipeline_mode = #tpu.pipeline_mode<synchronous>, transform_indices = @transform_3, window_bounds = array<i64: 128, 512>}, {pipeline_mode = #tpu.pipeline_mode<synchronous>, transform_indices = @transform_4, window_bounds = array<i64: 1, 512>}, {pipeline_mode = #tpu.pipeline_mode<synchronous>, transform_indices = @transform_5, window_bounds = array<i64: 512, 128>}, {pipeline_mode = #tpu.pipeline_mode<synchronous>, transform_indices = @transform_6, window_bounds = array<i64: 1, 128>}, {pipeline_mode = #tpu.pipeline_mode<synchronous>, transform_indices = @transform_7, window_bounds = array<i64: 128, 128>}, {pipeline_mode = #tpu.pipeline_mode<synchronous>, transform_indices = @transform_8, window_bounds = array<i64: 1, 128>}, {transform_indices = @transform_9, window_bounds = array<i64: 304, 128>}]} {
    %c0 = arith.constant 0 : index
    %c0_0 = arith.constant 0 : index
    %0 = vector.load %arg1[%c0, %c0_0] : memref<304x32xf32, #tpu.memory_space<vmem>>, vector<304x32xf32>
    %1 = arith.truncf %0 : vector<304x32xf32> to vector<304x32xbf16>
    %c0_1 = arith.constant 0 : index
    %c0_2 = arith.constant 0 : index
    %2 = vector.load %arg2[%c0_1, %c0_2] : memref<32x128xbf16, #tpu.memory_space<vmem>>, vector<32x128xbf16>
    %cst = arith.constant dense<0.000000e+00> : vector<304x128xf32>
    %3 = tpu.matmul %1, %2, %cst {dimension_numbers = #tpu.dot_dimension_numbers<[1], [0], [0], [1], [0, 0, 1, 1], [], []>} : vector<304x32xbf16>, vector<32x128xbf16>, vector<304x128xf32> -> vector<304x128xf32>
    %c0_3 = arith.constant 0 : index
    %c0_4 = arith.constant 0 : index
    %4 = vector.load %arg3[%c0_3, %c0_4] : memref<1x128xf32, #tpu.memory_space<vmem>>, vector<1x128xf32>
    %5 = vector.broadcast %4 : vector<1x128xf32> to vector<304x128xf32>
    %6 = arith.addf %3, %5 : vector<304x128xf32>
    %cst_5 = arith.constant 0.000000e+00 : f32
    %7 = vector.broadcast %cst_5 : f32 to vector<304x128xf32>
    %8 = arith.maximumf %6, %7 : vector<304x128xf32>
    %9 = arith.truncf %8 : vector<304x128xf32> to vector<304x128xbf16>
    %c0_6 = arith.constant 0 : index
    %c0_7 = arith.constant 0 : index
    %10 = vector.load %arg4[%c0_6, %c0_7] : memref<128x512xbf16, #tpu.memory_space<vmem>>, vector<128x512xbf16>
    %cst_8 = arith.constant dense<0.000000e+00> : vector<304x512xf32>
    %11 = tpu.matmul %9, %10, %cst_8 {dimension_numbers = #tpu.dot_dimension_numbers<[1], [0], [0], [1], [0, 0, 1, 1], [], []>} : vector<304x128xbf16>, vector<128x512xbf16>, vector<304x512xf32> -> vector<304x512xf32>
    %c0_9 = arith.constant 0 : index
    %c0_10 = arith.constant 0 : index
    %12 = vector.load %arg5[%c0_9, %c0_10] : memref<1x512xf32, #tpu.memory_space<vmem>>, vector<1x512xf32>
    %13 = vector.broadcast %12 : vector<1x512xf32> to vector<304x512xf32>
    %14 = arith.addf %11, %13 : vector<304x512xf32>
    %cst_11 = arith.constant 0.000000e+00 : f32
    %15 = vector.broadcast %cst_11 : f32 to vector<304x512xf32>
    %16 = arith.maximumf %14, %15 : vector<304x512xf32>
    %17 = arith.truncf %16 : vector<304x512xf32> to vector<304x512xbf16>
    %c0_12 = arith.constant 0 : index
    %c0_13 = arith.constant 0 : index
    %18 = vector.load %arg6[%c0_12, %c0_13] : memref<512x128xbf16, #tpu.memory_space<vmem>>, vector<512x128xbf16>
    %cst_14 = arith.constant dense<0.000000e+00> : vector<304x128xf32>
    %19 = tpu.matmul %17, %18, %cst_14 {dimension_numbers = #tpu.dot_dimension_numbers<[1], [0], [0], [1], [0, 0, 1, 1], [], []>} : vector<304x512xbf16>, vector<512x128xbf16>, vector<304x128xf32> -> vector<304x128xf32>
    %c0_15 = arith.constant 0 : index
    %c0_16 = arith.constant 0 : index
    %20 = vector.load %arg7[%c0_15, %c0_16] : memref<1x128xf32, #tpu.memory_space<vmem>>, vector<1x128xf32>
    %21 = vector.broadcast %20 : vector<1x128xf32> to vector<304x128xf32>
    %22 = arith.addf %19, %21 : vector<304x128xf32>
    %cst_17 = arith.constant 0.000000e+00 : f32
    %23 = vector.broadcast %cst_17 : f32 to vector<304x128xf32>
    %24 = arith.maximumf %22, %23 : vector<304x128xf32>
    %25 = arith.truncf %24 : vector<304x128xf32> to vector<304x128xbf16>
    %c0_18 = arith.constant 0 : index
    %c0_19 = arith.constant 0 : index
    %26 = vector.load %arg8[%c0_18, %c0_19] : memref<128x128xbf16, #tpu.memory_space<vmem>>, vector<128x128xbf16>
    %cst_20 = arith.constant dense<0.000000e+00> : vector<304x128xf32>
    %27 = tpu.matmul %25, %26, %cst_20 {dimension_numbers = #tpu.dot_dimension_numbers<[1], [0], [0], [1], [0, 0, 1, 1], [], []>} : vector<304x128xbf16>, vector<128x128xbf16>, vector<304x128xf32> -> vector<304x128xf32>
    %c0_21 = arith.constant 0 : index
    %c0_22 = arith.constant 0 : index
    %28 = vector.load %arg9[%c0_21, %c0_22] : memref<1x128xf32, #tpu.memory_space<vmem>>, vector<1x128xf32>
    %29 = vector.broadcast %28 : vector<1x128xf32> to vector<304x128xf32>
    %30 = arith.addf %27, %29 : vector<304x128xf32>
    %cst_23 = arith.constant 0.000000e+00 : f32
    %31 = vector.broadcast %cst_23 : f32 to vector<304x128xf32>
    %32 = arith.maximumf %30, %31 : vector<304x128xf32>
    %33 = math.absf %32 : vector<304x128xf32>
    %c0_24 = arith.constant 0 : index
    %c0_25 = arith.constant 0 : index
    %34 = vector.load %arg10[%c0_24, %c0_25] : memref<304x128xf32, #tpu.memory_space<vmem>>, vector<304x128xf32>
    tpu.vector_store %arg10[%c0_24, %c0_25], %33 {strides = array<i32>} : memref<304x128xf32, #tpu.memory_space<vmem>>, vector<304x128xf32>,
    return
  }
  func.func @transform_0(%arg0: i32) -> (i32, i32) {
    %c0_i32 = arith.constant 0 : i32
    %c0_i32_0 = arith.constant 0 : i32
    return %arg0, %c0_i32 : i32, i32
  }
  func.func @transform_1(%arg0: i32) -> (i32, i32) {
    %c0_i32 = arith.constant 0 : i32
    %c0_i32_0 = arith.constant 0 : i32
    %c0_i32_1 = arith.constant 0 : i32
    return %c0_i32, %c0_i32_0 : i32, i32
  }
  func.func @transform_2(%arg0: i32) -> (i32, i32) {
    %c0_i32 = arith.constant 0 : i32
    %c0_i32_0 = arith.constant 0 : i32
    %c0_i32_1 = arith.constant 0 : i32
    return %c0_i32, %c0_i32_0 : i32, i32
  }
  func.func @transform_3(%arg0: i32) -> (i32, i32) {
    %c0_i32 = arith.constant 0 : i32
    %c0_i32_0 = arith.constant 0 : i32
    %c0_i32_1 = arith.constant 0 : i32
    return %c0_i32, %c0_i32_0 : i32, i32
  }
  func.func @transform_4(%arg0: i32) -> (i32, i32) {
    %c0_i32 = arith.constant 0 : i32
    %c0_i32_0 = arith.constant 0 : i32
    %c0_i32_1 = arith.constant 0 : i32
    return %c0_i32, %c0_i32_0 : i32, i32
  }
  func.func @transform_5(%arg0: i32) -> (i32, i32) {
    %c0_i32 = arith.constant 0 : i32
    %c0_i32_0 = arith.constant 0 : i32
    %c0_i32_1 = arith.constant 0 : i32
    return %c0_i32, %c0_i32_0 : i32, i32
  }
  func.func @transform_6(%arg0: i32) -> (i32, i32) {
    %c0_i32 = arith.constant 0 : i32
    %c0_i32_0 = arith.constant 0 : i32
    %c0_i32_1 = arith.constant 0 : i32
    return %c0_i32, %c0_i32_0 : i32, i32
  }
  func.func @transform_7(%arg0: i32) -> (i32, i32) {
    %c0_i32 = arith.constant 0 : i32
    %c0_i32_0 = arith.constant 0 : i32
    %c0_i32_1 = arith.constant 0 : i32
    return %c0_i32, %c0_i32_0 : i32, i32
  }
  func.func @transform_8(%arg0: i32) -> (i32, i32) {
    %c0_i32 = arith.constant 0 : i32
    %c0_i32_0 = arith.constant 0 : i32
    %c0_i32_1 = arith.constant 0 : i32
    return %c0_i32, %c0_i32_0 : i32, i32
  }
  func.func @transform_9(%arg0: i32) -> (i32, i32) {
    %c0_i32 = arith.constant 0 : i32
    %c0_i32_0 = arith.constant 0 : i32
    return %arg0, %c0_i32 : i32, i32
  }
}

</mosaic_0001>

<llo_original>
// kernel: tpu_custom_call.1
$region0: #{tpu_custom_call.1}
  #allocation0 [shape = 'u32[]', space=smem, size = 0x4, offset = 0x4, fixed_abs, tag = 'smem constant byte address 0x4 - core index']
  #allocation1 [shape = 'u32[144,128]{1,0:T(1,128)}', space=vmem, size = 0x12000, scoped, tag = 'internal scratch']
  %s0 = inlined_call_operand.vmem [shape: f32[304,32], index: 0, kind: input, shape index: {}]
  %s1 = inlined_call_operand.vmem [shape: bf16[32,128], index: 1, kind: input, shape index: {}]
  %s2 = inlined_call_operand.vmem [shape: f32[1,128], index: 2, kind: input, shape index: {}]
  %s3 = inlined_call_operand.vmem [shape: bf16[128,512], index: 3, kind: input, shape index: {}]
  %s4 = inlined_call_operand.vmem [shape: f32[1,512], index: 4, kind: input, shape index: {}]
  %s5 = inlined_call_operand.hbm [shape: bf16[512,128], index: 5, kind: input, shape index: {}]
  %s6 = inlined_call_operand.vmem [shape: f32[1,128], index: 6, kind: input, shape index: {}]
  %s7 = inlined_call_operand.vmem [shape: bf16[128,128], index: 7, kind: input, shape index: {}]
  %s8 = inlined_call_operand.vmem [shape: f32[1,128], index: 8, kind: input, shape index: {}]
  %s9 = inlined_call_operand.hbm [shape: f32[304,128], index: 9, kind: output, shape index: {}]
  %s10 = sld [smem:[#allocation0]]
  $region50: #{tpu_custom_call.1} parent=0
    _
  %s12 = ssub.s32 1, %s10
  %s13 = scalar_select 0, %s12, %s10
  $region1: #{tpu_custom_call.1} parent=0
    #allocation2 [shape = 'u8[131072]{0}', space=vmem, size = 0x20000, scoped, tag = 'input window, operand 5, single buffered']
    #allocation3 [shape = 's32[1]{0}', space=sflag, size = 0x4, scoped, tag = 'scoped memory for tpu_custom_call.1']
    #allocation4 [shape = 's32[1]{0}', space=sflag, size = 0x4, scoped, tag = 'scoped memory for tpu_custom_call.1']
    #allocation5 [shape = 'u8[155648]{0}', space=vmem, size = 0x26000, scoped, tag = 'output window, operand 0, single buffered']
    %14 = vsyncpa [#allocation3], 0
    %15 = vsyncpa [#allocation4], 0
    // Predicated region
    $region2: #{tpu_custom_call.1} parent=1 // pred_check
      _
    $region3: #{tpu_custom_call.1} parent=1 // pred_check_branch
      %17 = sbr.rel (0) target = $region5
    $region4: #{tpu_custom_call.1} parent=1 // pred_region
      _
    $region5: #{tpu_custom_call.1} parent=1 // pred_fallthru
      _
    // Predicated region
    $region6: #{tpu_custom_call.1} parent=1 // pred_check
      _
    $region7: #{tpu_custom_call.1} parent=1 // pred_check_branch
      %19 = sbr.rel (0) target = $region9
    $region8: #{tpu_custom_call.1} parent=1 // pred_region
      _
    $region9: #{tpu_custom_call.1} parent=1 // pred_fallthru
      _
    // Predicated region
    $region10: #{tpu_custom_call.1} parent=1 // pred_check
      _
    $region11: #{tpu_custom_call.1} parent=1 // pred_check_branch
      %21 = sbr.rel (0) target = $region13
    $region12: #{tpu_custom_call.1} parent=1 // pred_region
      _
    $region13: #{tpu_custom_call.1} parent=1 // pred_fallthru
      _
    // Predicated region
    $region14: #{tpu_custom_call.1} parent=1 // pred_check
      _
    $region15: #{tpu_custom_call.1} parent=1 // pred_check_branch
      %23 = sbr.rel (0) target = $region17
    $region16: #{tpu_custom_call.1} parent=1 // pred_region
      _
    $region17: #{tpu_custom_call.1} parent=1 // pred_fallthru
      _
    // Predicated region
    $region18: #{tpu_custom_call.1} parent=1 // pred_check
      _
    $region19: #{tpu_custom_call.1} parent=1 // pred_check_branch
      %25 = sbr.rel (0) target = $region21
    $region20: #{tpu_custom_call.1} parent=1 // pred_region
      _
    $region21: #{tpu_custom_call.1} parent=1 // pred_fallthru
      _
    // Predicated region
    $region22: #{tpu_custom_call.1} parent=1 // pred_check
      _
    $region23: #{tpu_custom_call.1} parent=1 // pred_check_branch
      %27 = sbr.rel (0) target = $region25
    $region24: #{tpu_custom_call.1} parent=1 // pred_region
      %s29 = ssub.s32 4096, 4096
      %30 = vsyncadd [#allocation3], %s29
      %s31 = sshll.u32 [#allocation2], 4
      %s32 = int_to_ptr.vmem [resolvable:$true] %s31
      %37 = dma.hbm_to_vmem [thread:$0]  %s5, 4096, %s32, [#allocation3], 64, 64, 4
    $region25: #{tpu_custom_call.1} parent=1 // pred_fallthru
      _
    // Predicated region
    $region26: #{tpu_custom_call.1} parent=1 // pred_check
      _
    $region27: #{tpu_custom_call.1} parent=1 // pred_check_branch
      %39 = sbr.rel (0) target = $region29
    $region28: #{tpu_custom_call.1} parent=1 // pred_region
      _
    $region29: #{tpu_custom_call.1} parent=1 // pred_fallthru
      _
    // Predicated region
    $region30: #{tpu_custom_call.1} parent=1 // pred_check
      _
    $region31: #{tpu_custom_call.1} parent=1 // pred_check_branch
      %41 = sbr.rel (0) target = $region33
    $region32: #{tpu_custom_call.1} parent=1 // pred_region
      _
    $region33: #{tpu_custom_call.1} parent=1 // pred_fallthru
      _
    // Predicated region
    $region34: #{tpu_custom_call.1} parent=1 // pred_check
      _
    $region35: #{tpu_custom_call.1} parent=1 // pred_check_branch
      %43 = sbr.rel (0) target = $region37
    $region36: #{tpu_custom_call.1} parent=1 // pred_region
      _
    $region37: #{tpu_custom_call.1} parent=1 // pred_fallthru
      _
    // Predicated region
    $region38: #{tpu_custom_call.1} parent=1 // pred_check
      _
    $region39: #{tpu_custom_call.1} parent=1 // pred_check_branch
      %45 = sbr.rel (0) target = $region41
    $region40: #{tpu_custom_call.1} parent=1 // pred_region
      %46 = dma.done [#allocation3], 4096
    $region41: #{tpu_custom_call.1} parent=1 // pred_fallthru
      _
    %v48 = vld [vmem:[%s0] sm:$0xff]
    %v49 = vld [vmem:[%s0 + $0x8] sm:$0xff]
    %v50 = vld [vmem:[%s0 + $0x10] sm:$0xff]
    %v51 = vld [vmem:[%s0 + $0x18] sm:$0xff]
    %v52 = vld [vmem:[%s0 + $0x20] sm:$0xff]
    %v53 = vld [vmem:[%s0 + $0x28] sm:$0xff]
    %v54 = vld [vmem:[%s0 + $0x30] sm:$0xff]
    %v55 = vld [vmem:[%s0 + $0x38] sm:$0xff]
    %v56 = vld [vmem:[%s0 + $0x40] sm:$0xff]
    %v57 = vld [vmem:[%s0 + $0x48] sm:$0xff]
    %v58 = vld [vmem:[%s0 + $0x50] sm:$0xff]
    %v59 = vld [vmem:[%s0 + $0x58] sm:$0xff]
    %v60 = vld [vmem:[%s0 + $0x60] sm:$0xff]
    %v61 = vld [vmem:[%s0 + $0x68] sm:$0xff]
    %v62 = vld [vmem:[%s0 + $0x70] sm:$0xff]
    %v63 = vld [vmem:[%s0 + $0x78] sm:$0xff]
    %v64 = vld [vmem:[%s0 + $0x80] sm:$0xff]
    %v65 = vld [vmem:[%s0 + $0x88] sm:$0xff]
    %v66 = vld [vmem:[%s0 + $0x90] sm:$0xff]
    %v67 = vld [vmem:[%s0 + $0x98] sm:$0xff]
    %v68 = vld [vmem:[%s0 + $0xa0] sm:$0xff]
    %v69 = vld [vmem:[%s0 + $0xa8] sm:$0xff]
    %v70 = vld [vmem:[%s0 + $0xb0] sm:$0xff]
    %v71 = vld [vmem:[%s0 + $0xb8] sm:$0xff]
    %v72 = vld [vmem:[%s0 + $0xc0] sm:$0xff]
    %v73 = vld [vmem:[%s0 + $0xc8] sm:$0xff]
    %v74 = vld [vmem:[%s0 + $0xd0] sm:$0xff]
    %v75 = vld [vmem:[%s0 + $0xd8] sm:$0xff]
    %v76 = vld [vmem:[%s0 + $0xe0] sm:$0xff]
    %v77 = vld [vmem:[%s0 + $0xe8] sm:$0xff]
    %v78 = vld [vmem:[%s0 + $0xf0] sm:$0xff]
    %v79 = vld [vmem:[%s0 + $0xf8] sm:$0xff]
    %v80 = vld [vmem:[%s0 + $0x100] sm:$0xff]
    %v81 = vld [vmem:[%s0 + $0x108] sm:$0xff]
    %v82 = vld [vmem:[%s0 + $0x110] sm:$0xff]
    %v83 = vld [vmem:[%s0 + $0x118] sm:$0xff]
    %v84 = vld [vmem:[%s0 + $0x120] sm:$0xff]
    %v85 = vld [vmem:[%s0 + $0x128] sm:$0xff]
    %v86 = vpack.c.bf16 %v49, %v48
    %v87 = vpack.c.bf16 %v51, %v50
    %v88 = vpack.c.bf16 %v53, %v52
    %v89 = vpack.c.bf16 %v55, %v54
    %v90 = vpack.c.bf16 %v57, %v56
    %v91 = vpack.c.bf16 %v59, %v58
    %v92 = vpack.c.bf16 %v61, %v60
    %v93 = vpack.c.bf16 %v63, %v62
    %v94 = vpack.c.bf16 %v65, %v64
    %v95 = vpack.c.bf16 %v67, %v66
    %v96 = vpack.c.bf16 %v69, %v68
    %v97 = vpack.c.bf16 %v71, %v70
    %v98 = vpack.c.bf16 %v73, %v72
    %v99 = vpack.c.bf16 %v75, %v74
    %v100 = vpack.c.bf16 %v77, %v76
    %v101 = vpack.c.bf16 %v79, %v78
    %v102 = vpack.c.bf16 %v81, %v80
    %v103 = vpack.c.bf16 %v83, %v82
    %v104 = vpack.c.bf16 %v85, %v84
    %v105 = vld [vmem:[%s1] sm:$0xf]
    %v106 = vld [vmem:[%s1 + $0x4] sm:$0xf]
    %v107 = vld [vmem:[%s1 + $0x8] sm:$0xf]
    %v108 = vld [vmem:[%s1 + $0xc] sm:$0xf]
    %v109 = vld [vmem:[%s2] sm:$0x1]
    %v111 = vlaneseq
    %v112 = vshrl.u32 %v111, 7
    %v113 = vsub.s32 0, %v112
    %v114 = vrot.slane %v109, %v113
    %v120 = vunpack.c.l.b16 %v105
    %v121 = vunpack.c.l.b16 %v106
    %v122 = vunpack.c.l.b16 %v107
    %v123 = vunpack.c.l.b16 %v108
    %v124 = vpack.c.b16 %v121, %v120
    %v125 = vpack.c.b16 %v123, %v122
    %vm128 = vcmask 261120
    %v130 = vsel %vm128, %v86, 0
    %v133 = vsel %vm128, %v87, 0
    %v136 = vsel %vm128, %v88, 0
    %v139 = vsel %vm128, %v89, 0
    %v142 = vsel %vm128, %v90, 0
    %v145 = vsel %vm128, %v91, 0
    %v148 = vsel %vm128, %v92, 0
    %v151 = vsel %vm128, %v93, 0
    %v154 = vsel %vm128, %v94, 0
    %v157 = vsel %vm128, %v95, 0
    %v160 = vsel %vm128, %v96, 0
    %v163 = vsel %vm128, %v97, 0
    %v166 = vsel %vm128, %v98, 0
    %v169 = vsel %vm128, %v99, 0
    %v172 = vsel %vm128, %v100, 0
    %v175 = vsel %vm128, %v101, 0
    %v178 = vsel %vm128, %v102, 0
    %v181 = vsel %vm128, %v103, 0
    %v184 = vsel %vm128, %v104, 0
    %186 = vmatprep.subr.bf16.mxu0 0
    %187 = vmatpush1.bf16.msra.mxu0 %v124
    %188 = vmatprep.subr.bf16.mxu0 0
    %189 = vmatpush1.bf16.msra.mxu0 %v125
    %190 = vmatprep.subr.bf16.mxu0 0
    %191 = vmatpush1.bf16.msra.mxu0 0
    %192 = vmatprep.subr.bf16.mxu0 0
    %193 = vmatpush1.bf16.msra.mxu0 0
    %194 = vmatprep.subr.bf16.mxu0 0
    %195 = vmatpush1.bf16.msra.mxu0 0
    %196 = vmatprep.subr.bf16.mxu0 0
    %197 = vmatpush1.bf16.msra.mxu0 0
    %198 = vmatprep.subr.bf16.mxu0 0
    %199 = vmatpush1.bf16.msra.mxu0 0
    %200 = vmatprep.subr.bf16.mxu0 0
    %201 = vmatpush1.bf16.msra.mxu0 0
    %202 = vmatprep.subr.bf16.mxu0 0
    %203 = vmatpush1.bf16.msra.mxu0 0
    %204 = vmatprep.subr.bf16.mxu0 0
    %205 = vmatpush1.bf16.msra.mxu0 0
    %206 = vmatprep.subr.bf16.mxu0 0
    %207 = vmatpush1.bf16.msra.mxu0 0
    %208 = vmatprep.subr.bf16.mxu0 0
    %209 = vmatpush1.bf16.msra.mxu0 0
    %210 = vmatprep.subr.bf16.mxu0 0
    %211 = vmatpush1.bf16.msra.mxu0 0
    %212 = vmatprep.subr.bf16.mxu0 0
    %213 = vmatpush1.bf16.msra.mxu0 0
    %214 = vmatprep.subr.bf16.mxu0 0
    %215 = vmatpush1.bf16.msra.mxu0 0
    %216 = vmatprep.subr.bf16.mxu0 0
    %217 = vmatpush1.bf16.msra.mxu0 0
    %218 = vmatprep.mubr.bf16.mxu0 0
    %219 = vmatmul.mubr.bf16.gmra.mrb[0].mxu0 %v130
    %v220 = vpop.f32.mrb[0].mxu0
    %v221 = vadd.f32 %v114, %v220
    %v222 = vpop.f32.mrb[0].mxu0
    %v223 = vpop.f32.mrb[0].mxu0
    %v224 = vadd.f32 %v114, %v223
    %v225 = vpop.f32.mrb[0].mxu0
    %226 = vmatprep.mubr.bf16.mxu0 0
    %227 = vmatmul.mubr.bf16.gmra.mrb[0].mxu0 %v133
    %v228 = vpop.f32.mrb[0].mxu0
    %v229 = vadd.f32 %v114, %v228
    %v230 = vpop.f32.mrb[0].mxu0
    %v231 = vpop.f32.mrb[0].mxu0
    %v232 = vadd.f32 %v114, %v231
    %v233 = vpop.f32.mrb[0].mxu0
    %234 = vmatprep.mubr.bf16.mxu0 0
    %235 = vmatmul.mubr.bf16.gmra.mrb[0].mxu0 %v136
    %v236 = vpop.f32.mrb[0].mxu0
    %v237 = vadd.f32 %v114, %v236
    %v238 = vpop.f32.mrb[0].mxu0
    %v239 = vpop.f32.mrb[0].mxu0
    %v240 = vadd.f32 %v114, %v239
    %v241 = vpop.f32.mrb[0].mxu0
    %242 = vmatprep.mubr.bf16.mxu0 0
    %243 = vmatmul.mubr.bf16.gmra.mrb[0].mxu0 %v139
    %v244 = vpop.f32.mrb[0].mxu0
    %v245 = vadd.f32 %v114, %v244
    %v246 = vpop.f32.mrb[0].mxu0
    %v247 = vpop.f32.mrb[0].mxu0
    %v248 = vadd.f32 %v114, %v247
    %v249 = vpop.f32.mrb[0].mxu0
    %250 = vmatprep.mubr.bf16.mxu0 0
    %251 = vmatmul.mubr.bf16.gmra.mrb[0].mxu0 %v142
    %v252 = vpop.f32.mrb[0].mxu0
    %v253 = vadd.f32 %v114, %v252
    %v254 = vpop.f32.mrb[0].mxu0
    %v255 = vpop.f32.mrb[0].mxu0
    %v256 = vadd.f32 %v114, %v255
    %v257 = vpop.f32.mrb[0].mxu0
    %258 = vmatprep.mubr.bf16.mxu0 0
    %259 = vmatmul.mubr.bf16.gmra.mrb[0].mxu0 %v145
    %v260 = vpop.f32.mrb[0].mxu0
    %v261 = vadd.f32 %v114, %v260
    %v262 = vpop.f32.mrb[0].mxu0
    %v263 = vpop.f32.mrb[0].mxu0
    %v264 = vadd.f32 %v114, %v263
    %v265 = vpop.f32.mrb[0].mxu0
    %266 = vmatprep.mubr.bf16.mxu0 0
    %267 = vmatmul.mubr.bf16.gmra.mrb[0].mxu0 %v148
    %v268 = vpop.f32.mrb[0].mxu0
    %v269 = vadd.f32 %v114, %v268
    %v270 = vpop.f32.mrb[0].mxu0
    %v271 = vpop.f32.mrb[0].mxu0
    %v272 = vadd.f32 %v114, %v271
    %v273 = vpop.f32.mrb[0].mxu0
    %274 = vmatprep.mubr.bf16.mxu0 0
    %275 = vmatmul.mubr.bf16.gmra.mrb[0].mxu0 %v151
    %v276 = vpop.f32.mrb[0].mxu0
    %v277 = vadd.f32 %v114, %v276
    %v278 = vpop.f32.mrb[0].mxu0
    %v279 = vpop.f32.mrb[0].mxu0
    %v280 = vadd.f32 %v114, %v279
    %v281 = vpop.f32.mrb[0].mxu0
    %282 = vmatprep.mubr.bf16.mxu0 0
    %283 = vmatmul.mubr.bf16.gmra.mrb[0].mxu0 %v154
    %v284 = vpop.f32.mrb[0].mxu0
    %v285 = vadd.f32 %v114, %v284
    %v286 = vpop.f32.mrb[0].mxu0
    %v287 = vpop.f32.mrb[0].mxu0
    %v288 = vadd.f32 %v114, %v287
    %v289 = vpop.f32.mrb[0].mxu0
    %290 = vmatprep.mubr.bf16.mxu0 0
    %291 = vmatmul.mubr.bf16.gmra.mrb[0].mxu0 %v157
    %v292 = vpop.f32.mrb[0].mxu0
    %v293 = vadd.f32 %v114, %v292
    %v294 = vpop.f32.mrb[0].mxu0
    %v295 = vpop.f32.mrb[0].mxu0
    %v296 = vadd.f32 %v114, %v295
    %v297 = vpop.f32.mrb[0].mxu0
    %298 = vmatprep.mubr.bf16.mxu0 0
    %299 = vmatmul.mubr.bf16.gmra.mrb[0].mxu0 %v160
    %v300 = vpop.f32.mrb[0].mxu0
    %v301 = vadd.f32 %v114, %v300
    %v302 = vpop.f32.mrb[0].mxu0
    %v303 = vpop.f32.mrb[0].mxu0
    %v304 = vadd.f32 %v114, %v303
    %v305 = vpop.f32.mrb[0].mxu0
    %306 = vmatprep.mubr.bf16.mxu0 0
    %307 = vmatmul.mubr.bf16.gmra.mrb[0].mxu0 %v163
    %v308 = vpop.f32.mrb[0].mxu0
    %v309 = vadd.f32 %v114, %v308
    %v310 = vpop.f32.mrb[0].mxu0
    %v311 = vpop.f32.mrb[0].mxu0
    %v312 = vadd.f32 %v114, %v311
    %v313 = vpop.f32.mrb[0].mxu0
    %314 = vmatprep.mubr.bf16.mxu0 0
    %315 = vmatmul.mubr.bf16.gmra.mrb[0].mxu0 %v166
    %v316 = vpop.f32.mrb[0].mxu0
    %v317 = vadd.f32 %v114, %v316
    %v318 = vpop.f32.mrb[0].mxu0
    %v319 = vpop.f32.mrb[0].mxu0
    %v320 = vadd.f32 %v114, %v319
    %v321 = vpop.f32.mrb[0].mxu0
    %322 = vmatprep.mubr.bf16.mxu0 0
    %323 = vmatmul.mubr.bf16.gmra.mrb[0].mxu0 %v169
    %v324 = vpop.f32.mrb[0].mxu0
    %v325 = vadd.f32 %v114, %v324
    %v326 = vpop.f32.mrb[0].mxu0
    %v327 = vpop.f32.mrb[0].mxu0
    %v328 = vadd.f32 %v114, %v327
    %v329 = vpop.f32.mrb[0].mxu0
    %330 = vmatprep.mubr.bf16.mxu0 0
    %331 = vmatmul.mubr.bf16.gmra.mrb[0].mxu0 %v172
    %v332 = vpop.f32.mrb[0].mxu0
    %v333 = vadd.f32 %v114, %v332
    %v334 = vpop.f32.mrb[0].mxu0
    %v335 = vpop.f32.mrb[0].mxu0
    %v336 = vadd.f32 %v114, %v335
    %v337 = vpop.f32.mrb[0].mxu0
    %338 = vmatprep.mubr.bf16.mxu0 0
    %339 = vmatmul.mubr.bf16.gmra.mrb[0].mxu0 %v175
    %v340 = vpop.f32.mrb[0].mxu0
    %v341 = vadd.f32 %v114, %v340
    %v342 = vpop.f32.mrb[0].mxu0
    %v343 = vpop.f32.mrb[0].mxu0
    %v344 = vadd.f32 %v114, %v343
    %v345 = vpop.f32.mrb[0].mxu0
    %346 = vmatprep.mubr.bf16.mxu0 0
    %347 = vmatmul.mubr.bf16.gmra.mrb[0].mxu0 %v178
    %v348 = vpop.f32.mrb[0].mxu0
    %v349 = vadd.f32 %v114, %v348
    %v350 = vpop.f32.mrb[0].mxu0
    %v351 = vpop.f32.mrb[0].mxu0
    %v352 = vadd.f32 %v114, %v351
    %v353 = vpop.f32.mrb[0].mxu0
    %354 = vmatprep.mubr.bf16.mxu0 0
    %355 = vmatmul.mubr.bf16.gmra.mrb[0].mxu0 %v181
    %v356 = vpop.f32.mrb[0].mxu0
    %v357 = vadd.f32 %v114, %v356
    %v358 = vpop.f32.mrb[0].mxu0
    %v359 = vpop.f32.mrb[0].mxu0
    %v360 = vadd.f32 %v114, %v359
    %v361 = vpop.f32.mrb[0].mxu0
    %362 = vmatprep.mubr.bf16.mxu0 0
    %363 = vmatmul.mubr.bf16.gmra.mrb[0].mxu0 %v184
    %v364 = vpop.f32.mrb[0].mxu0
    %v365 = vadd.f32 %v114, %v364
    %v366 = vpop.f32.mrb[0].mxu0
    %v367 = vpop.f32.mrb[0].mxu0
    %v368 = vadd.f32 %v114, %v367
    %v369 = vpop.f32.mrb[0].mxu0
    %370 = vdwg.mxu0
    %v371 = vmax.f32 %v221, 0.0
    %v372 = vmax.f32 %v224, 0.0
    %v373 = vmax.f32 %v229, 0.0
    %v374 = vmax.f32 %v232, 0.0
    %v375 = vmax.f32 %v237, 0.0
    %v376 = vmax.f32 %v240, 0.0
    %v377 = vmax.f32 %v245, 0.0
    %v378 = vmax.f32 %v248, 0.0
    %v379 = vmax.f32 %v253, 0.0
    %v380 = vmax.f32 %v256, 0.0
    %v381 = vmax.f32 %v261, 0.0
    %v382 = vmax.f32 %v264, 0.0
    %v383 = vmax.f32 %v269, 0.0
    %v384 = vmax.f32 %v272, 0.0
    %v385 = vmax.f32 %v277, 0.0
    %v386 = vmax.f32 %v280, 0.0
    %v387 = vmax.f32 %v285, 0.0
    %v388 = vmax.f32 %v288, 0.0
    %v389 = vmax.f32 %v293, 0.0
    %v390 = vmax.f32 %v296, 0.0
    %v391 = vmax.f32 %v301, 0.0
    %v392 = vmax.f32 %v304, 0.0
    %v393 = vmax.f32 %v309, 0.0
    %v394 = vmax.f32 %v312, 0.0
    %v395 = vmax.f32 %v317, 0.0
    %v396 = vmax.f32 %v320, 0.0
    %v397 = vmax.f32 %v325, 0.0
    %v398 = vmax.f32 %v328, 0.0
    %v399 = vmax.f32 %v333, 0.0
    %v400 = vmax.f32 %v336, 0.0
    %v401 = vmax.f32 %v341, 0.0
    %v402 = vmax.f32 %v344, 0.0
    %v403 = vmax.f32 %v349, 0.0
    %v404 = vmax.f32 %v352, 0.0
    %v405 = vmax.f32 %v357, 0.0
    %v406 = vmax.f32 %v360, 0.0
    %v407 = vmax.f32 %v365, 0.0
    %v408 = vmax.f32 %v368, 0.0
    %v409 = vpack.c.bf16 %v372, %v371
    %v410 = vpack.c.bf16 %v374, %v373
    %v411 = vpack.c.bf16 %v376, %v375
    %v412 = vpack.c.bf16 %v378, %v377
    %v413 = vpack.c.bf16 %v380, %v379
    %v414 = vpack.c.bf16 %v382, %v381
    %v415 = vpack.c.bf16 %v384, %v383
    %v416 = vpack.c.bf16 %v386, %v385
    %v417 = vpack.c.bf16 %v388, %v387
    %v418 = vpack.c.bf16 %v390, %v389
    %v419 = vpack.c.bf16 %v392, %v391
    %v420 = vpack.c.bf16 %v394, %v393
    %v421 = vpack.c.bf16 %v396, %v395
    %v422 = vpack.c.bf16 %v398, %v397
    %v423 = vpack.c.bf16 %v400, %v399
    %v424 = vpack.c.bf16 %v402, %v401
    %v425 = vpack.c.bf16 %v404, %v403
    %v426 = vpack.c.bf16 %v406, %v405
    %v427 = vpack.c.bf16 %v408, %v407
    %v428 = vld [vmem:[%s3] sm:$0xff]
    %v429 = vld [vmem:[%s3 + $0x8] sm:$0xff]
    %v430 = vld [vmem:[%s3 + $0x10] sm:$0xff]
    %v431 = vld [vmem:[%s3 + $0x18] sm:$0xff]
    %v432 = vld [vmem:[%s3 + $0x20] sm:$0xff]
    %v433 = vld [vmem:[%s3 + $0x28] sm:$0xff]
    %v434 = vld [vmem:[%s3 + $0x30] sm:$0xff]
    %v435 = vld [vmem:[%s3 + $0x38] sm:$0xff]
    %v436 = vld [vmem:[%s3 + $0x40] sm:$0xff]
    %v437 = vld [vmem:[%s3 + $0x48] sm:$0xff]
    %v438 = vld [vmem:[%s3 + $0x50] sm:$0xff]
    %v439 = vld [vmem:[%s3 + $0x58] sm:$0xff]
    %v440 = vld [vmem:[%s3 + $0x60] sm:$0xff]
    %v441 = vld [vmem:[%s3 + $0x68] sm:$0xff]
    %v442 = vld [vmem:[%s3 + $0x70] sm:$0xff]
    %v443 = vld [vmem:[%s3 + $0x78] sm:$0xff]
    %v444 = vld [vmem:[%s3 + $0x80] sm:$0xff]
    %v445 = vld [vmem:[%s3 + $0x88] sm:$0xff]
    %v446 = vld [vmem:[%s3 + $0x90] sm:$0xff]
    %v447 = vld [vmem:[%s3 + $0x98] sm:$0xff]
    %v448 = vld [vmem:[%s3 + $0xa0] sm:$0xff]
    %v449 = vld [vmem:[%s3 + $0xa8] sm:$0xff]
    %v450 = vld [vmem:[%s3 + $0xb0] sm:$0xff]
    %v451 = vld [vmem:[%s3 + $0xb8] sm:$0xff]
    %v452 = vld [vmem:[%s3 + $0xc0] sm:$0xff]
    %v453 = vld [vmem:[%s3 + $0xc8] sm:$0xff]
    %v454 = vld [vmem:[%s3 + $0xd0] sm:$0xff]
    %v455 = vld [vmem:[%s3 + $0xd8] sm:$0xff]
    %v456 = vld [vmem:[%s3 + $0xe0] sm:$0xff]
    %v457 = vld [vmem:[%s3 + $0xe8] sm:$0xff]
    %v458 = vld [vmem:[%s3 + $0xf0] sm:$0xff]
    %v459 = vld [vmem:[%s3 + $0xf8] sm:$0xff]
    %v460 = vld [vmem:[%s4] sm:$0xf]
    %v462 = vlaneseq
    %v463 = vshrl.u32 %v462, 7
    %v464 = vsub.s32 0, %v463
    %v465 = vrot.slane %v460, %v464
    %v466 = vlaneseq
    %v467 = vshrl.u32 %v466, 7
    %v468 = vsub.s32 1, %v467
    %v469 = vrot.slane %v460, %v468
    %v470 = vlaneseq
    %v471 = vshrl.u32 %v470, 7
    %v472 = vsub.s32 2, %v471
    %v473 = vrot.slane %v460, %v472
    %v474 = vlaneseq
    %v475 = vshrl.u32 %v474, 7
    %v476 = vsub.s32 3, %v475
    %v477 = vrot.slane %v460, %v476
    %v514 = vunpack.c.l.b16 %v428
    %v515 = vunpack.c.h.b16 %v428
    %v516 = vunpack.c.l.b16 %v429
    %v517 = vunpack.c.h.b16 %v429
    %v518 = vunpack.c.l.b16 %v430
    %v519 = vunpack.c.h.b16 %v430
    %v520 = vunpack.c.l.b16 %v431
    %v521 = vunpack.c.h.b16 %v431
    %v522 = vunpack.c.l.b16 %v432
    %v523 = vunpack.c.h.b16 %v432
    %v524 = vunpack.c.l.b16 %v433
    %v525 = vunpack.c.h.b16 %v433
    %v526 = vunpack.c.l.b16 %v434
    %v527 = vunpack.c.h.b16 %v434
    %v528 = vunpack.c.l.b16 %v435
    %v529 = vunpack.c.h.b16 %v435
    %v530 = vunpack.c.l.b16 %v436
    %v531 = vunpack.c.h.b16 %v436
    %v532 = vunpack.c.l.b16 %v437
    %v533 = vunpack.c.h.b16 %v437
    %v534 = vunpack.c.l.b16 %v438
    %v535 = vunpack.c.h.b16 %v438
    %v536 = vunpack.c.l.b16 %v439
    %v537 = vunpack.c.h.b16 %v439
    %v538 = vunpack.c.l.b16 %v440
    %v539 = vunpack.c.h.b16 %v440
    %v540 = vunpack.c.l.b16 %v441
    %v541 = vunpack.c.h.b16 %v441
    %v542 = vunpack.c.l.b16 %v442
    %v543 = vunpack.c.h.b16 %v442
    %v544 = vunpack.c.l.b16 %v443
    %v545 = vunpack.c.h.b16 %v443
    %v546 = vunpack.c.l.b16 %v444
    %v547 = vunpack.c.h.b16 %v444
    %v548 = vunpack.c.l.b16 %v445
    %v549 = vunpack.c.h.b16 %v445
    %v550 = vunpack.c.l.b16 %v446
    %v551 = vunpack.c.h.b16 %v446
    %v552 = vunpack.c.l.b16 %v447
    %v553 = vunpack.c.h.b16 %v447
    %v554 = vunpack.c.l.b16 %v448
    %v555 = vunpack.c.h.b16 %v448
    %v556 = vunpack.c.l.b16 %v449
    %v557 = vunpack.c.h.b16 %v449
    %v558 = vunpack.c.l.b16 %v450
    %v559 = vunpack.c.h.b16 %v450
    %v560 = vunpack.c.l.b16 %v451
    %v561 = vunpack.c.h.b16 %v451
    %v562 = vunpack.c.l.b16 %v452
    %v563 = vunpack.c.h.b16 %v452
    %v564 = vunpack.c.l.b16 %v453
    %v565 = vunpack.c.h.b16 %v453
    %v566 = vunpack.c.l.b16 %v454
    %v567 = vunpack.c.h.b16 %v454
    %v568 = vunpack.c.l.b16 %v455
    %v569 = vunpack.c.h.b16 %v455
    %v570 = vunpack.c.l.b16 %v456
    %v571 = vunpack.c.h.b16 %v456
    %v572 = vunpack.c.l.b16 %v457
    %v573 = vunpack.c.h.b16 %v457
    %v574 = vunpack.c.l.b16 %v458
    %v575 = vunpack.c.h.b16 %v458
    %v576 = vunpack.c.l.b16 %v459
    %v577 = vunpack.c.h.b16 %v459
    %v578 = vpack.c.b16 %v518, %v514
    %v579 = vpack.c.b16 %v519, %v515
    %v580 = vpack.c.b16 %v520, %v516
    %v581 = vpack.c.b16 %v521, %v517
    %v582 = vpack.c.b16 %v526, %v522
    %v583 = vpack.c.b16 %v527, %v523
    %v584 = vpack.c.b16 %v528, %v524
    %v585 = vpack.c.b16 %v529, %v525
    %v586 = vpack.c.b16 %v534, %v530
    %v587 = vpack.c.b16 %v535, %v531
    %v588 = vpack.c.b16 %v536, %v532
    %v589 = vpack.c.b16 %v537, %v533
    %v590 = vpack.c.b16 %v542, %v538
    %v591 = vpack.c.b16 %v543, %v539
    %v592 = vpack.c.b16 %v544, %v540
    %v593 = vpack.c.b16 %v545, %v541
    %v594 = vpack.c.b16 %v550, %v546
    %v595 = vpack.c.b16 %v551, %v547
    %v596 = vpack.c.b16 %v552, %v548
    %v597 = vpack.c.b16 %v553, %v549
    %v598 = vpack.c.b16 %v558, %v554
    %v599 = vpack.c.b16 %v559, %v555
    %v600 = vpack.c.b16 %v560, %v556
    %v601 = vpack.c.b16 %v561, %v557
    %v602 = vpack.c.b16 %v566, %v562
    %v603 = vpack.c.b16 %v567, %v563
    %v604 = vpack.c.b16 %v568, %v564
    %v605 = vpack.c.b16 %v569, %v565
    %v606 = vpack.c.b16 %v574, %v570
    %v607 = vpack.c.b16 %v575, %v571
    %v608 = vpack.c.b16 %v576, %v572
    %v609 = vpack.c.b16 %v577, %v573
    %642 = vmatprep.subr.bf16.mxu0 %v579
    %643 = vmatpush1.bf16.msra.mxu0 %v578
    %644 = vmatprep.subr.bf16.mxu0 %v583
    %645 = vmatpush1.bf16.msra.mxu0 %v582
    %646 = vmatprep.subr.bf16.mxu0 %v587
    %647 = vmatpush1.bf16.msra.mxu0 %v586
    %648 = vmatprep.subr.bf16.mxu0 %v591
    %649 = vmatpush1.bf16.msra.mxu0 %v590
    %650 = vmatprep.subr.bf16.mxu0 %v595
    %651 = vmatpush1.bf16.msra.mxu0 %v594
    %652 = vmatprep.subr.bf16.mxu0 %v599
    %653 = vmatpush1.bf16.msra.mxu0 %v598
    %654 = vmatprep.subr.bf16.mxu0 %v603
    %655 = vmatpush1.bf16.msra.mxu0 %v602
    %656 = vmatprep.subr.bf16.mxu0 %v607
    %657 = vmatpush1.bf16.msra.mxu0 %v606
    %658 = vmatprep.subr.bf16.mxu0 0
    %659 = vmatpush1.bf16.msra.mxu0 0
    %660 = vmatprep.subr.bf16.mxu0 0
    %661 = vmatpush1.bf16.msra.mxu0 0
    %662 = vmatprep.subr.bf16.mxu0 0
    %663 = vmatpush1.bf16.msra.mxu0 0
    %664 = vmatprep.subr.bf16.mxu0 0
    %665 = vmatpush1.bf16.msra.mxu0 0
    %666 = vmatprep.subr.bf16.mxu0 0
    %667 = vmatpush1.bf16.msra.mxu0 0
    %668 = vmatprep.subr.bf16.mxu0 0
    %669 = vmatpush1.bf16.msra.mxu0 0
    %670 = vmatprep.subr.bf16.mxu0 0
    %671 = vmatpush1.bf16.msra.mxu0 0
    %672 = vmatprep.subr.bf16.mxu0 0
    %673 = vmatpush1.bf16.msra.mxu0 0
    %674 = vmatprep.mubr.bf16.mxu0 0
    %675 = vmatmul.mubr.bf16.gmra.mrb[0].mxu0 %v409
    %v676 = vpop.f32.mrb[0].mxu0
    %v677 = vadd.f32 %v465, %v676
    %v678 = vpop.f32.mrb[0].mxu0
    %v679 = vadd.f32 %v469, %v678
    %v680 = vpop.f32.mrb[0].mxu0
    %v681 = vadd.f32 %v465, %v680
    %v682 = vpop.f32.mrb[0].mxu0
    %v683 = vadd.f32 %v469, %v682
    %684 = vmatprep.mubr.bf16.mxu0 0
    %685 = vmatmul.mubr.bf16.gmra.mrb[0].mxu0 %v410
    %v686 = vpop.f32.mrb[0].mxu0
    %v687 = vadd.f32 %v465, %v686
    %v688 = vpop.f32.mrb[0].mxu0
    %v689 = vadd.f32 %v469, %v688
    %v690 = vpop.f32.mrb[0].mxu0
    %v691 = vadd.f32 %v465, %v690
    %v692 = vpop.f32.mrb[0].mxu0
    %v693 = vadd.f32 %v469, %v692
    %694 = vmatprep.mubr.bf16.mxu0 0
    %695 = vmatmul.mubr.bf16.gmra.mrb[0].mxu0 %v411
    %v696 = vpop.f32.mrb[0].mxu0
    %v697 = vadd.f32 %v465, %v696
    %v698 = vpop.f32.mrb[0].mxu0
    %v699 = vadd.f32 %v469, %v698
    %v700 = vpop.f32.mrb[0].mxu0
    %v701 = vadd.f32 %v465, %v700
    %v702 = vpop.f32.mrb[0].mxu0
    %v703 = vadd.f32 %v469, %v702
    %704 = vmatprep.mubr.bf16.mxu0 0
    %705 = vmatmul.mubr.bf16.gmra.mrb[0].mxu0 %v412
    %v706 = vpop.f32.mrb[0].mxu0
    %v707 = vadd.f32 %v465, %v706
    %v708 = vpop.f32.mrb[0].mxu0
    %v709 = vadd.f32 %v469, %v708
    %v710 = vpop.f32.mrb[0].mxu0
    %v711 = vadd.f32 %v465, %v710
    %v712 = vpop.f32.mrb[0].mxu0
    %v713 = vadd.f32 %v469, %v712
    %714 = vmatprep.mubr.bf16.mxu0 0
    %715 = vmatmul.mubr.bf16.gmra.mrb[0].mxu0 %v413
    %v716 = vpop.f32.mrb[0].mxu0
    %v717 = vadd.f32 %v465, %v716
    %v718 = vpop.f32.mrb[0].mxu0
    %v719 = vadd.f32 %v469, %v718
    %v720 = vpop.f32.mrb[0].mxu0
    %v721 = vadd.f32 %v465, %v720
    %v722 = vpop.f32.mrb[0].mxu0
    %v723 = vadd.f32 %v469, %v722
    %724 = vmatprep.mubr.bf16.mxu0 0
    %725 = vmatmul.mubr.bf16.gmra.mrb[0].mxu0 %v414
    %v726 = vpop.f32.mrb[0].mxu0
    %v727 = vadd.f32 %v465, %v726
    %v728 = vpop.f32.mrb[0].mxu0
    %v729 = vadd.f32 %v469, %v728
    %v730 = vpop.f32.mrb[0].mxu0
    %v731 = vadd.f32 %v465, %v730
    %v732 = vpop.f32.mrb[0].mxu0
    %v733 = vadd.f32 %v469, %v732
    %734 = vmatprep.mubr.bf16.mxu0 0
    %735 = vmatmul.mubr.bf16.gmra.mrb[0].mxu0 %v415
    %v736 = vpop.f32.mrb[0].mxu0
    %v737 = vadd.f32 %v465, %v736
    %v738 = vpop.f32.mrb[0].mxu0
    %v739 = vadd.f32 %v469, %v738
    %v740 = vpop.f32.mrb[0].mxu0
    %v741 = vadd.f32 %v465, %v740
    %v742 = vpop.f32.mrb[0].mxu0
    %v743 = vadd.f32 %v469, %v742
    %744 = vmatprep.mubr.bf16.mxu0 0
    %745 = vmatmul.mubr.bf16.gmra.mrb[0].mxu0 %v416
    %v746 = vpop.f32.mrb[0].mxu0
    %v747 = vadd.f32 %v465, %v746
    %v748 = vpop.f32.mrb[0].mxu0
    %v749 = vadd.f32 %v469, %v748
    %v750 = vpop.f32.mrb[0].mxu0
    %v751 = vadd.f32 %v465, %v750
    %v752 = vpop.f32.mrb[0].mxu0
    %v753 = vadd.f32 %v469, %v752
    %754 = vmatprep.mubr.bf16.mxu0 0
    %755 = vmatmul.mubr.bf16.gmra.mrb[0].mxu0 %v417
    %v756 = vpop.f32.mrb[0].mxu0
    %v757 = vadd.f32 %v465, %v756
    %v758 = vpop.f32.mrb[0].mxu0
    %v759 = vadd.f32 %v469, %v758
    %v760 = vpop.f32.mrb[0].mxu0
    %v761 = vadd.f32 %v465, %v760
    %v762 = vpop.f32.mrb[0].mxu0
    %v763 = vadd.f32 %v469, %v762
    %764 = vmatprep.mubr.bf16.mxu0 0
    %765 = vmatmul.mubr.bf16.gmra.mrb[0].mxu0 %v418
    %v766 = vpop.f32.mrb[0].mxu0
    %v767 = vadd.f32 %v465, %v766
    %v768 = vpop.f32.mrb[0].mxu0
    %v769 = vadd.f32 %v469, %v768
    %v770 = vpop.f32.mrb[0].mxu0
    %v771 = vadd.f32 %v465, %v770
    %v772 = vpop.f32.mrb[0].mxu0
    %v773 = vadd.f32 %v469, %v772
    %774 = vmatprep.mubr.bf16.mxu0 0
    %775 = vmatmul.mubr.bf16.gmra.mrb[0].mxu0 %v419
    %v776 = vpop.f32.mrb[0].mxu0
    %v777 = vadd.f32 %v465, %v776
    %v778 = vpop.f32.mrb[0].mxu0
    %v779 = vadd.f32 %v469, %v778
    %v780 = vpop.f32.mrb[0].mxu0
    %v781 = vadd.f32 %v465, %v780
    %v782 = vpop.f32.mrb[0].mxu0
    %v783 = vadd.f32 %v469, %v782
    %784 = vmatprep.mubr.bf16.mxu0 0
    %785 = vmatmul.mubr.bf16.gmra.mrb[0].mxu0 %v420
    %v786 = vpop.f32.mrb[0].mxu0
    %v787 = vadd.f32 %v465, %v786
    %v788 = vpop.f32.mrb[0].mxu0
    %v789 = vadd.f32 %v469, %v788
    %v790 = vpop.f32.mrb[0].mxu0
    %v791 = vadd.f32 %v465, %v790
    %v792 = vpop.f32.mrb[0].mxu0
    %v793 = vadd.f32 %v469, %v792
    %794 = vmatprep.mubr.bf16.mxu0 0
    %795 = vmatmul.mubr.bf16.gmra.mrb[0].mxu0 %v421
    %v796 = vpop.f32.mrb[0].mxu0
    %v797 = vadd.f32 %v465, %v796
    %v798 = vpop.f32.mrb[0].mxu0
    %v799 = vadd.f32 %v469, %v798
    %v800 = vpop.f32.mrb[0].mxu0
    %v801 = vadd.f32 %v465, %v800
    %v802 = vpop.f32.mrb[0].mxu0
    %v803 = vadd.f32 %v469, %v802
    %804 = vmatprep.mubr.bf16.mxu0 0
    %805 = vmatmul.mubr.bf16.gmra.mrb[0].mxu0 %v422
    %v806 = vpop.f32.mrb[0].mxu0
    %v807 = vadd.f32 %v465, %v806
    %v808 = vpop.f32.mrb[0].mxu0
    %v809 = vadd.f32 %v469, %v808
    %v810 = vpop.f32.mrb[0].mxu0
    %v811 = vadd.f32 %v465, %v810
    %v812 = vpop.f32.mrb[0].mxu0
    %v813 = vadd.f32 %v469, %v812
    %814 = vmatprep.mubr.bf16.mxu0 0
    %815 = vmatmul.mubr.bf16.gmra.mrb[0].mxu0 %v423
    %v816 = vpop.f32.mrb[0].mxu0
    %v817 = vadd.f32 %v465, %v816
    %v818 = vpop.f32.mrb[0].mxu0
    %v819 = vadd.f32 %v469, %v818
    %v820 = vpop.f32.mrb[0].mxu0
    %v821 = vadd.f32 %v465, %v820
    %v822 = vpop.f32.mrb[0].mxu0
    %v823 = vadd.f32 %v469, %v822
    %824 = vmatprep.mubr.bf16.mxu0 0
    %825 = vmatmul.mubr.bf16.gmra.mrb[0].mxu0 %v424
    %v826 = vpop.f32.mrb[0].mxu0
    %v827 = vadd.f32 %v465, %v826
    %v828 = vpop.f32.mrb[0].mxu0
    %v829 = vadd.f32 %v469, %v828
    %v830 = vpop.f32.mrb[0].mxu0
    %v831 = vadd.f32 %v465, %v830
    %v832 = vpop.f32.mrb[0].mxu0
    %v833 = vadd.f32 %v469, %v832
    %834 = vmatprep.mubr.bf16.mxu0 0
    %835 = vmatmul.mubr.bf16.gmra.mrb[0].mxu0 %v425
    %v836 = vpop.f32.mrb[0].mxu0
    %v837 = vadd.f32 %v465, %v836
    %v838 = vpop.f32.mrb[0].mxu0
    %v839 = vadd.f32 %v469, %v838
    %v840 = vpop.f32.mrb[0].mxu0
    %v841 = vadd.f32 %v465, %v840
    %v842 = vpop.f32.mrb[0].mxu0
    %v843 = vadd.f32 %v469, %v842
    %844 = vmatprep.mubr.bf16.mxu0 0
    %845 = vmatmul.mubr.bf16.gmra.mrb[0].mxu0 %v426
    %v846 = vpop.f32.mrb[0].mxu0
    %v847 = vadd.f32 %v465, %v846
    %v848 = vpop.f32.mrb[0].mxu0
    %v849 = vadd.f32 %v469, %v848
    %v850 = vpop.f32.mrb[0].mxu0
    %v851 = vadd.f32 %v465, %v850
    %v852 = vpop.f32.mrb[0].mxu0
    %v853 = vadd.f32 %v469, %v852
    %854 = vmatprep.mubr.bf16.mxu0 0
    %855 = vmatmul.mubr.bf16.gmra.mrb[0].mxu0 %v427
    %v856 = vpop.f32.mrb[0].mxu0
    %v857 = vadd.f32 %v465, %v856
    %v858 = vpop.f32.mrb[0].mxu0
    %v859 = vadd.f32 %v469, %v858
    %v860 = vpop.f32.mrb[0].mxu0
    %v861 = vadd.f32 %v465, %v860
    %v862 = vpop.f32.mrb[0].mxu0
    %v863 = vadd.f32 %v469, %v862
    %864 = vdwg.mxu0
    %865 = vmatprep.subr.bf16.mxu0 %v581
    %866 = vmatpush1.bf16.msra.mxu0 %v580
    %867 = vmatprep.subr.bf16.mxu0 %v585
    %868 = vmatpush1.bf16.msra.mxu0 %v584
    %869 = vmatprep.subr.bf16.mxu0 %v589
    %870 = vmatpush1.bf16.msra.mxu0 %v588
    %871 = vmatprep.subr.bf16.mxu0 %v593
    %872 = vmatpush1.bf16.msra.mxu0 %v592
    %873 = vmatprep.subr.bf16.mxu0 %v597
    %874 = vmatpush1.bf16.msra.mxu0 %v596
    %875 = vmatprep.subr.bf16.mxu0 %v601
    %876 = vmatpush1.bf16.msra.mxu0 %v600
    %877 = vmatprep.subr.bf16.mxu0 %v605
    %878 = vmatpush1.bf16.msra.mxu0 %v604
    %879 = vmatprep.subr.bf16.mxu0 %v609
    %880 = vmatpush1.bf16.msra.mxu0 %v608
    %881 = vmatprep.subr.bf16.mxu0 0
    %882 = vmatpush1.bf16.msra.mxu0 0
    %883 = vmatprep.subr.bf16.mxu0 0
    %884 = vmatpush1.bf16.msra.mxu0 0
    %885 = vmatprep.subr.bf16.mxu0 0
    %886 = vmatpush1.bf16.msra.mxu0 0
    %887 = vmatprep.subr.bf16.mxu0 0
    %888 = vmatpush1.bf16.msra.mxu0 0
    %889 = vmatprep.subr.bf16.mxu0 0
    %890 = vmatpush1.bf16.msra.mxu0 0
    %891 = vmatprep.subr.bf16.mxu0 0
    %892 = vmatpush1.bf16.msra.mxu0 0
    %893 = vmatprep.subr.bf16.mxu0 0
    %894 = vmatpush1.bf16.msra.mxu0 0
    %895 = vmatprep.subr.bf16.mxu0 0
    %896 = vmatpush1.bf16.msra.mxu0 0
    %897 = vmatprep.mubr.bf16.mxu0 0
    %898 = vmatmul.mubr.bf16.gmra.mrb[0].mxu0 %v409
    %v899 = vpop.f32.mrb[0].mxu0
    %v900 = vadd.f32 %v473, %v899
    %v901 = vpop.f32.mrb[0].mxu0
    %v902 = vadd.f32 %v477, %v901
    %v903 = vpop.f32.mrb[0].mxu0
    %v904 = vadd.f32 %v473, %v903
    %v905 = vpop.f32.mrb[0].mxu0
    %v906 = vadd.f32 %v477, %v905
    %907 = vmatprep.mubr.bf16.mxu0 0
    %908 = vmatmul.mubr.bf16.gmra.mrb[0].mxu0 %v410
    %v909 = vpop.f32.mrb[0].mxu0
    %v910 = vadd.f32 %v473, %v909
    %v911 = vpop.f32.mrb[0].mxu0
    %v912 = vadd.f32 %v477, %v911
    %v913 = vpop.f32.mrb[0].mxu0
    %v914 = vadd.f32 %v473, %v913
    %v915 = vpop.f32.mrb[0].mxu0
    %v916 = vadd.f32 %v477, %v915
    %917 = vmatprep.mubr.bf16.mxu0 0
    %918 = vmatmul.mubr.bf16.gmra.mrb[0].mxu0 %v411
    %v919 = vpop.f32.mrb[0].mxu0
    %v920 = vadd.f32 %v473, %v919
    %v921 = vpop.f32.mrb[0].mxu0
    %v922 = vadd.f32 %v477, %v921
    %v923 = vpop.f32.mrb[0].mxu0
    %v924 = vadd.f32 %v473, %v923
    %v925 = vpop.f32.mrb[0].mxu0
    %v926 = vadd.f32 %v477, %v925
    %927 = vmatprep.mubr.bf16.mxu0 0
    %928 = vmatmul.mubr.bf16.gmra.mrb[0].mxu0 %v412
    %v929 = vpop.f32.mrb[0].mxu0
    %v930 = vadd.f32 %v473, %v929
    %v931 = vpop.f32.mrb[0].mxu0
    %v932 = vadd.f32 %v477, %v931
    %v933 = vpop.f32.mrb[0].mxu0
    %v934 = vadd.f32 %v473, %v933
    %v935 = vpop.f32.mrb[0].mxu0
    %v936 = vadd.f32 %v477, %v935
    %937 = vmatprep.mubr.bf16.mxu0 0
    %938 = vmatmul.mubr.bf16.gmra.mrb[0].mxu0 %v413
    %v939 = vpop.f32.mrb[0].mxu0
    %v940 = vadd.f32 %v473, %v939
    %v941 = vpop.f32.mrb[0].mxu0
    %v942 = vadd.f32 %v477, %v941
    %v943 = vpop.f32.mrb[0].mxu0
    %v944 = vadd.f32 %v473, %v943
    %v945 = vpop.f32.mrb[0].mxu0
    %v946 = vadd.f32 %v477, %v945
    %947 = vmatprep.mubr.bf16.mxu0 0
    %948 = vmatmul.mubr.bf16.gmra.mrb[0].mxu0 %v414
    %v949 = vpop.f32.mrb[0].mxu0
    %v950 = vadd.f32 %v473, %v949
    %v951 = vpop.f32.mrb[0].mxu0
    %v952 = vadd.f32 %v477, %v951
    %v953 = vpop.f32.mrb[0].mxu0
    %v954 = vadd.f32 %v473, %v953
    %v955 = vpop.f32.mrb[0].mxu0
    %v956 = vadd.f32 %v477, %v955
    %957 = vmatprep.mubr.bf16.mxu0 0
    %958 = vmatmul.mubr.bf16.gmra.mrb[0].mxu0 %v415
    %v959 = vpop.f32.mrb[0].mxu0
    %v960 = vadd.f32 %v473, %v959
    %v961 = vpop.f32.mrb[0].mxu0
    %v962 = vadd.f32 %v477, %v961
    %v963 = vpop.f32.mrb[0].mxu0
    %v964 = vadd.f32 %v473, %v963
    %v965 = vpop.f32.mrb[0].mxu0
    %v966 = vadd.f32 %v477, %v965
    %967 = vmatprep.mubr.bf16.mxu0 0
    %968 = vmatmul.mubr.bf16.gmra.mrb[0].mxu0 %v416
    %v969 = vpop.f32.mrb[0].mxu0
    %v970 = vadd.f32 %v473, %v969
    %v971 = vpop.f32.mrb[0].mxu0
    %v972 = vadd.f32 %v477, %v971
    %v973 = vpop.f32.mrb[0].mxu0
    %v974 = vadd.f32 %v473, %v973
    %v975 = vpop.f32.mrb[0].mxu0
    %v976 = vadd.f32 %v477, %v975
    %977 = vmatprep.mubr.bf16.mxu0 0
    %978 = vmatmul.mubr.bf16.gmra.mrb[0].mxu0 %v417
    %v979 = vpop.f32.mrb[0].mxu0
    %v980 = vadd.f32 %v473, %v979
    %v981 = vpop.f32.mrb[0].mxu0
    %v982 = vadd.f32 %v477, %v981
    %v983 = vpop.f32.mrb[0].mxu0
    %v984 = vadd.f32 %v473, %v983
    %v985 = vpop.f32.mrb[0].mxu0
    %v986 = vadd.f32 %v477, %v985
    %987 = vmatprep.mubr.bf16.mxu0 0
    %988 = vmatmul.mubr.bf16.gmra.mrb[0].mxu0 %v418
    %v989 = vpop.f32.mrb[0].mxu0
    %v990 = vadd.f32 %v473, %v989
    %v991 = vpop.f32.mrb[0].mxu0
    %v992 = vadd.f32 %v477, %v991
    %v993 = vpop.f32.mrb[0].mxu0
    %v994 = vadd.f32 %v473, %v993
    %v995 = vpop.f32.mrb[0].mxu0
    %v996 = vadd.f32 %v477, %v995
    %997 = vmatprep.mubr.bf16.mxu0 0
    %998 = vmatmul.mubr.bf16.gmra.mrb[0].mxu0 %v419
    %v999 = vpop.f32.mrb[0].mxu0
    %v1000 = vadd.f32 %v473, %v999
    %v1001 = vpop.f32.mrb[0].mxu0
    %v1002 = vadd.f32 %v477, %v1001
    %v1003 = vpop.f32.mrb[0].mxu0
    %v1004 = vadd.f32 %v473, %v1003
    %v1005 = vpop.f32.mrb[0].mxu0
    %v1006 = vadd.f32 %v477, %v1005
    %1007 = vmatprep.mubr.bf16.mxu0 0
    %1008 = vmatmul.mubr.bf16.gmra.mrb[0].mxu0 %v420
    %v1009 = vpop.f32.mrb[0].mxu0
    %v1010 = vadd.f32 %v473, %v1009
    %v1011 = vpop.f32.mrb[0].mxu0
    %v1012 = vadd.f32 %v477, %v1011
    %v1013 = vpop.f32.mrb[0].mxu0
    %v1014 = vadd.f32 %v473, %v1013
    %v1015 = vpop.f32.mrb[0].mxu0
    %v1016 = vadd.f32 %v477, %v1015
    %1017 = vmatprep.mubr.bf16.mxu0 0
    %1018 = vmatmul.mubr.bf16.gmra.mrb[0].mxu0 %v421
    %v1019 = vpop.f32.mrb[0].mxu0
    %v1020 = vadd.f32 %v473, %v1019
    %v1021 = vpop.f32.mrb[0].mxu0
    %v1022 = vadd.f32 %v477, %v1021
    %v1023 = vpop.f32.mrb[0].mxu0
    %v1024 = vadd.f32 %v473, %v1023
    %v1025 = vpop.f32.mrb[0].mxu0
    %v1026 = vadd.f32 %v477, %v1025
    %1027 = vmatprep.mubr.bf16.mxu0 0
    %1028 = vmatmul.mubr.bf16.gmra.mrb[0].mxu0 %v422
    %v1029 = vpop.f32.mrb[0].mxu0
    %v1030 = vadd.f32 %v473, %v1029
    %v1031 = vpop.f32.mrb[0].mxu0
    %v1032 = vadd.f32 %v477, %v1031
    %v1033 = vpop.f32.mrb[0].mxu0
    %v1034 = vadd.f32 %v473, %v1033
    %v1035 = vpop.f32.mrb[0].mxu0
    %v1036 = vadd.f32 %v477, %v1035
    %1037 = vmatprep.mubr.bf16.mxu0 0
    %1038 = vmatmul.mubr.bf16.gmra.mrb[0].mxu0 %v423
    %v1039 = vpop.f32.mrb[0].mxu0
    %v1040 = vadd.f32 %v473, %v1039
    %v1041 = vpop.f32.mrb[0].mxu0
    %v1042 = vadd.f32 %v477, %v1041
    %v1043 = vpop.f32.mrb[0].mxu0
    %v1044 = vadd.f32 %v473, %v1043
    %v1045 = vpop.f32.mrb[0].mxu0
    %v1046 = vadd.f32 %v477, %v1045
    %1047 = vmatprep.mubr.bf16.mxu0 0
    %1048 = vmatmul.mubr.bf16.gmra.mrb[0].mxu0 %v424
    %v1049 = vpop.f32.mrb[0].mxu0
    %v1050 = vadd.f32 %v473, %v1049
    %v1051 = vpop.f32.mrb[0].mxu0
    %v1052 = vadd.f32 %v477, %v1051
    %v1053 = vpop.f32.mrb[0].mxu0
    %v1054 = vadd.f32 %v473, %v1053
    %v1055 = vpop.f32.mrb[0].mxu0
    %v1056 = vadd.f32 %v477, %v1055
    %1057 = vmatprep.mubr.bf16.mxu0 0
    %1058 = vmatmul.mubr.bf16.gmra.mrb[0].mxu0 %v425
    %v1059 = vpop.f32.mrb[0].mxu0
    %v1060 = vadd.f32 %v473, %v1059
    %v1061 = vpop.f32.mrb[0].mxu0
    %v1062 = vadd.f32 %v477, %v1061
    %v1063 = vpop.f32.mrb[0].mxu0
    %v1064 = vadd.f32 %v473, %v1063
    %v1065 = vpop.f32.mrb[0].mxu0
    %v1066 = vadd.f32 %v477, %v1065
    %1067 = vmatprep.mubr.bf16.mxu0 0
    %1068 = vmatmul.mubr.bf16.gmra.mrb[0].mxu0 %v426
    %v1069 = vpop.f32.mrb[0].mxu0
    %v1070 = vadd.f32 %v473, %v1069
    %v1071 = vpop.f32.mrb[0].mxu0
    %v1072 = vadd.f32 %v477, %v1071
    %v1073 = vpop.f32.mrb[0].mxu0
    %v1074 = vadd.f32 %v473, %v1073
    %v1075 = vpop.f32.mrb[0].mxu0
    %v1076 = vadd.f32 %v477, %v1075
    %1077 = vmatprep.mubr.bf16.mxu0 0
    %1078 = vmatmul.mubr.bf16.gmra.mrb[0].mxu0 %v427
    %v1079 = vpop.f32.mrb[0].mxu0
    %v1080 = vadd.f32 %v473, %v1079
    %v1081 = vpop.f32.mrb[0].mxu0
    %v1082 = vadd.f32 %v477, %v1081
    %v1083 = vpop.f32.mrb[0].mxu0
    %v1084 = vadd.f32 %v473, %v1083
    %v1085 = vpop.f32.mrb[0].mxu0
    %v1086 = vadd.f32 %v477, %v1085
    %1087 = vdwg.mxu0
    %v1088 = vmax.f32 %v677, 0.0
    %v1089 = vmax.f32 %v679, 0.0
    %v1090 = vmax.f32 %v900, 0.0
    %v1091 = vmax.f32 %v902, 0.0
    %v1092 = vmax.f32 %v681, 0.0
    %v1093 = vmax.f32 %v683, 0.0
    %v1094 = vmax.f32 %v904, 0.0
    %v1095 = vmax.f32 %v906, 0.0
    %v1096 = vmax.f32 %v687, 0.0
    %v1097 = vmax.f32 %v689, 0.0
    %v1098 = vmax.f32 %v910, 0.0
    %v1099 = vmax.f32 %v912, 0.0
    %v1100 = vmax.f32 %v691, 0.0
    %v1101 = vmax.f32 %v693, 0.0
    %v1102 = vmax.f32 %v914, 0.0
    %v1103 = vmax.f32 %v916, 0.0
    %v1104 = vmax.f32 %v697, 0.0
    %v1105 = vmax.f32 %v699, 0.0
    %v1106 = vmax.f32 %v920, 0.0
    %v1107 = vmax.f32 %v922, 0.0
    %v1108 = vmax.f32 %v701, 0.0
    %v1109 = vmax.f32 %v703, 0.0
    %v1110 = vmax.f32 %v924, 0.0
    %v1111 = vmax.f32 %v926, 0.0
    %v1112 = vmax.f32 %v707, 0.0
    %v1113 = vmax.f32 %v709, 0.0
    %v1114 = vmax.f32 %v930, 0.0
    %v1115 = vmax.f32 %v932, 0.0
    %v1116 = vmax.f32 %v711, 0.0
    %v1117 = vmax.f32 %v713, 0.0
    %v1118 = vmax.f32 %v934, 0.0
    %v1119 = vmax.f32 %v936, 0.0
    %v1120 = vmax.f32 %v717, 0.0
    %v1121 = vmax.f32 %v719, 0.0
    %v1122 = vmax.f32 %v940, 0.0
    %v1123 = vmax.f32 %v942, 0.0
    %v1124 = vmax.f32 %v721, 0.0
    %v1125 = vmax.f32 %v723, 0.0
    %v1126 = vmax.f32 %v944, 0.0
    %v1127 = vmax.f32 %v946, 0.0
    %v1128 = vmax.f32 %v727, 0.0
    %v1129 = vmax.f32 %v729, 0.0
    %v1130 = vmax.f32 %v950, 0.0
    %v1131 = vmax.f32 %v952, 0.0
    %v1132 = vmax.f32 %v731, 0.0
    %v1133 = vmax.f32 %v733, 0.0
    %v1134 = vmax.f32 %v954, 0.0
    %v1135 = vmax.f32 %v956, 0.0
    %v1136 = vmax.f32 %v737, 0.0
    %v1137 = vmax.f32 %v739, 0.0
    %v1138 = vmax.f32 %v960, 0.0
    %v1139 = vmax.f32 %v962, 0.0
    %v1140 = vmax.f32 %v741, 0.0
    %v1141 = vmax.f32 %v743, 0.0
    %v1142 = vmax.f32 %v964, 0.0
    %v1143 = vmax.f32 %v966, 0.0
    %v1144 = vmax.f32 %v747, 0.0
    %v1145 = vmax.f32 %v749, 0.0
    %v1146 = vmax.f32 %v970, 0.0
    %v1147 = vmax.f32 %v972, 0.0
    %v1148 = vmax.f32 %v751, 0.0
    %v1149 = vmax.f32 %v753, 0.0
    %v1150 = vmax.f32 %v974, 0.0
    %v1151 = vmax.f32 %v976, 0.0
    %v1152 = vmax.f32 %v757, 0.0
    %v1153 = vmax.f32 %v759, 0.0
    %v1154 = vmax.f32 %v980, 0.0
    %v1155 = vmax.f32 %v982, 0.0
    %v1156 = vmax.f32 %v761, 0.0
    %v1157 = vmax.f32 %v763, 0.0
    %v1158 = vmax.f32 %v984, 0.0
    %v1159 = vmax.f32 %v986, 0.0
    %v1160 = vmax.f32 %v767, 0.0
    %v1161 = vmax.f32 %v769, 0.0
    %v1162 = vmax.f32 %v990, 0.0
    %v1163 = vmax.f32 %v992, 0.0
    %v1164 = vmax.f32 %v771, 0.0
    %v1165 = vmax.f32 %v773, 0.0
    %v1166 = vmax.f32 %v994, 0.0
    %v1167 = vmax.f32 %v996, 0.0
    %v1168 = vmax.f32 %v777, 0.0
    %v1169 = vmax.f32 %v779, 0.0
    %v1170 = vmax.f32 %v1000, 0.0
    %v1171 = vmax.f32 %v1002, 0.0
    %v1172 = vmax.f32 %v781, 0.0
    %v1173 = vmax.f32 %v783, 0.0
    %v1174 = vmax.f32 %v1004, 0.0
    %v1175 = vmax.f32 %v1006, 0.0
    %v1176 = vmax.f32 %v787, 0.0
    %v1177 = vmax.f32 %v789, 0.0
    %v1178 = vmax.f32 %v1010, 0.0
    %v1179 = vmax.f32 %v1012, 0.0
    %v1180 = vmax.f32 %v791, 0.0
    %v1181 = vmax.f32 %v793, 0.0
    %v1182 = vmax.f32 %v1014, 0.0
    %v1183 = vmax.f32 %v1016, 0.0
    %v1184 = vmax.f32 %v797, 0.0
    %v1185 = vmax.f32 %v799, 0.0
    %v1186 = vmax.f32 %v1020, 0.0
    %v1187 = vmax.f32 %v1022, 0.0
    %v1188 = vmax.f32 %v801, 0.0
    %v1189 = vmax.f32 %v803, 0.0
    %v1190 = vmax.f32 %v1024, 0.0
    %v1191 = vmax.f32 %v1026, 0.0
    %v1192 = vmax.f32 %v807, 0.0
    %v1193 = vmax.f32 %v809, 0.0
    %v1194 = vmax.f32 %v1030, 0.0
    %v1195 = vmax.f32 %v1032, 0.0
    %v1196 = vmax.f32 %v811, 0.0
    %v1197 = vmax.f32 %v813, 0.0
    %v1198 = vmax.f32 %v1034, 0.0
    %v1199 = vmax.f32 %v1036, 0.0
    %v1200 = vmax.f32 %v817, 0.0
    %v1201 = vmax.f32 %v819, 0.0
    %v1202 = vmax.f32 %v1040, 0.0
    %v1203 = vmax.f32 %v1042, 0.0
    %v1204 = vmax.f32 %v821, 0.0
    %v1205 = vmax.f32 %v823, 0.0
    %v1206 = vmax.f32 %v1044, 0.0
    %v1207 = vmax.f32 %v1046, 0.0
    %v1208 = vmax.f32 %v827, 0.0
    %v1209 = vmax.f32 %v829, 0.0
    %v1210 = vmax.f32 %v1050, 0.0
    %v1211 = vmax.f32 %v1052, 0.0
    %v1212 = vmax.f32 %v831, 0.0
    %v1213 = vmax.f32 %v833, 0.0
    %v1214 = vmax.f32 %v1054, 0.0
    %v1215 = vmax.f32 %v1056, 0.0
    %v1216 = vmax.f32 %v837, 0.0
    %v1217 = vmax.f32 %v839, 0.0
    %v1218 = vmax.f32 %v1060, 0.0
    %v1219 = vmax.f32 %v1062, 0.0
    %v1220 = vmax.f32 %v841, 0.0
    %v1221 = vmax.f32 %v843, 0.0
    %v1222 = vmax.f32 %v1064, 0.0
    %v1223 = vmax.f32 %v1066, 0.0
    %v1224 = vmax.f32 %v847, 0.0
    %v1225 = vmax.f32 %v849, 0.0
    %v1226 = vmax.f32 %v1070, 0.0
    %v1227 = vmax.f32 %v1072, 0.0
    %v1228 = vmax.f32 %v851, 0.0
    %v1229 = vmax.f32 %v853, 0.0
    %v1230 = vmax.f32 %v1074, 0.0
    %v1231 = vmax.f32 %v1076, 0.0
    %v1232 = vmax.f32 %v857, 0.0
    %v1233 = vmax.f32 %v859, 0.0
    %v1234 = vmax.f32 %v1080, 0.0
    %v1235 = vmax.f32 %v1082, 0.0
    %v1236 = vmax.f32 %v861, 0.0
    %v1237 = vmax.f32 %v863, 0.0
    %v1238 = vmax.f32 %v1084, 0.0
    %v1239 = vmax.f32 %v1086, 0.0
    %v1240 = vpack.c.bf16 %v1092, %v1088
    %v1241 = vpack.c.bf16 %v1093, %v1089
    %v1242 = vpack.c.bf16 %v1094, %v1090
    %v1243 = vpack.c.bf16 %v1095, %v1091
    %v1244 = vpack.c.bf16 %v1100, %v1096
    %v1245 = vpack.c.bf16 %v1101, %v1097
    %v1246 = vpack.c.bf16 %v1102, %v1098
    %v1247 = vpack.c.bf16 %v1103, %v1099
    %v1248 = vpack.c.bf16 %v1108, %v1104
    %v1249 = vpack.c.bf16 %v1109, %v1105
    %v1250 = vpack.c.bf16 %v1110, %v1106
    %v1251 = vpack.c.bf16 %v1111, %v1107
    %v1252 = vpack.c.bf16 %v1116, %v1112
    %v1253 = vpack.c.bf16 %v1117, %v1113
    %v1254 = vpack.c.bf16 %v1118, %v1114
    %v1255 = vpack.c.bf16 %v1119, %v1115
    %v1256 = vpack.c.bf16 %v1124, %v1120
    %v1257 = vpack.c.bf16 %v1125, %v1121
    %v1258 = vpack.c.bf16 %v1126, %v1122
    %v1259 = vpack.c.bf16 %v1127, %v1123
    %v1260 = vpack.c.bf16 %v1132, %v1128
    %v1261 = vpack.c.bf16 %v1133, %v1129
    %v1262 = vpack.c.bf16 %v1134, %v1130
    %v1263 = vpack.c.bf16 %v1135, %v1131
    %v1264 = vpack.c.bf16 %v1140, %v1136
    %v1265 = vpack.c.bf16 %v1141, %v1137
    %v1266 = vpack.c.bf16 %v1142, %v1138
    %v1267 = vpack.c.bf16 %v1143, %v1139
    %v1268 = vpack.c.bf16 %v1148, %v1144
    %v1269 = vpack.c.bf16 %v1149, %v1145
    %v1270 = vpack.c.bf16 %v1150, %v1146
    %v1271 = vpack.c.bf16 %v1151, %v1147
    %v1272 = vpack.c.bf16 %v1156, %v1152
    %v1273 = vpack.c.bf16 %v1157, %v1153
    %v1274 = vpack.c.bf16 %v1158, %v1154
    %v1275 = vpack.c.bf16 %v1159, %v1155
    %v1276 = vpack.c.bf16 %v1164, %v1160
    %v1277 = vpack.c.bf16 %v1165, %v1161
    %v1278 = vpack.c.bf16 %v1166, %v1162
    %v1279 = vpack.c.bf16 %v1167, %v1163
    %v1280 = vpack.c.bf16 %v1172, %v1168
    %v1281 = vpack.c.bf16 %v1173, %v1169
    %v1282 = vpack.c.bf16 %v1174, %v1170
    %v1283 = vpack.c.bf16 %v1175, %v1171
    %v1284 = vpack.c.bf16 %v1180, %v1176
    %v1285 = vpack.c.bf16 %v1181, %v1177
    %v1286 = vpack.c.bf16 %v1182, %v1178
    %v1287 = vpack.c.bf16 %v1183, %v1179
    %v1288 = vpack.c.bf16 %v1188, %v1184
    %v1289 = vpack.c.bf16 %v1189, %v1185
    %v1290 = vpack.c.bf16 %v1190, %v1186
    %v1291 = vpack.c.bf16 %v1191, %v1187
    %v1292 = vpack.c.bf16 %v1196, %v1192
    %v1293 = vpack.c.bf16 %v1197, %v1193
    %v1294 = vpack.c.bf16 %v1198, %v1194
    %v1295 = vpack.c.bf16 %v1199, %v1195
    %v1296 = vpack.c.bf16 %v1204, %v1200
    %v1297 = vpack.c.bf16 %v1205, %v1201
    %v1298 = vpack.c.bf16 %v1206, %v1202
    %v1299 = vpack.c.bf16 %v1207, %v1203
    %v1300 = vpack.c.bf16 %v1212, %v1208
    %v1301 = vpack.c.bf16 %v1213, %v1209
    %v1302 = vpack.c.bf16 %v1214, %v1210
    %v1303 = vpack.c.bf16 %v1215, %v1211
    %v1304 = vpack.c.bf16 %v1220, %v1216
    %v1305 = vpack.c.bf16 %v1221, %v1217
    %v1306 = vpack.c.bf16 %v1222, %v1218
    %v1307 = vpack.c.bf16 %v1223, %v1219
    %v1308 = vpack.c.bf16 %v1228, %v1224
    %v1309 = vpack.c.bf16 %v1229, %v1225
    %v1310 = vpack.c.bf16 %v1230, %v1226
    %v1311 = vpack.c.bf16 %v1231, %v1227
    %v1312 = vpack.c.bf16 %v1236, %v1232
    %v1313 = vpack.c.bf16 %v1237, %v1233
    %v1314 = vpack.c.bf16 %v1238, %v1234
    %v1315 = vpack.c.bf16 %v1239, %v1235
    %v1316 = vld [vmem:[#allocation2] sm:$0xf]
    %v1317 = vld [vmem:[#allocation2 + $0x4] sm:$0xf]
    %v1318 = vld [vmem:[#allocation2 + $0x8] sm:$0xf]
    %v1319 = vld [vmem:[#allocation2 + $0xc] sm:$0xf]
    %v1320 = vld [vmem:[#allocation2 + $0x10] sm:$0xf]
    %v1321 = vld [vmem:[#allocation2 + $0x14] sm:$0xf]
    %v1322 = vld [vmem:[#allocation2 + $0x18] sm:$0xf]
    %v1323 = vld [vmem:[#allocation2 + $0x1c] sm:$0xf]
    %v1324 = vld [vmem:[#allocation2 + $0x20] sm:$0xf]
    %v1325 = vld [vmem:[#allocation2 + $0x24] sm:$0xf]
    %v1326 = vld [vmem:[#allocation2 + $0x28] sm:$0xf]
    %v1327 = vld [vmem:[#allocation2 + $0x2c] sm:$0xf]
    %v1328 = vld [vmem:[#allocation2 + $0x30] sm:$0xf]
    %v1329 = vld [vmem:[#allocation2 + $0x34] sm:$0xf]
    %v1330 = vld [vmem:[#allocation2 + $0x38] sm:$0xf]
    %v1331 = vld [vmem:[#allocation2 + $0x3c] sm:$0xf]
    %v1332 = vld [vmem:[#allocation2 + $0x40] sm:$0xf]
    %v1333 = vld [vmem:[#allocation2 + $0x44] sm:$0xf]
    %v1334 = vld [vmem:[#allocation2 + $0x48] sm:$0xf]
    %v1335 = vld [vmem:[#allocation2 + $0x4c] sm:$0xf]
    %v1336 = vld [vmem:[#allocation2 + $0x50] sm:$0xf]
    %v1337 = vld [vmem:[#allocation2 + $0x54] sm:$0xf]
    %v1338 = vld [vmem:[#allocation2 + $0x58] sm:$0xf]
    %v1339 = vld [vmem:[#allocation2 + $0x5c] sm:$0xf]
    %v1340 = vld [vmem:[#allocation2 + $0x60] sm:$0xf]
    %v1341 = vld [vmem:[#allocation2 + $0x64] sm:$0xf]
    %v1342 = vld [vmem:[#allocation2 + $0x68] sm:$0xf]
    %v1343 = vld [vmem:[#allocation2 + $0x6c] sm:$0xf]
    %v1344 = vld [vmem:[#allocation2 + $0x70] sm:$0xf]
    %v1345 = vld [vmem:[#allocation2 + $0x74] sm:$0xf]
    %v1346 = vld [vmem:[#allocation2 + $0x78] sm:$0xf]
    %v1347 = vld [vmem:[#allocation2 + $0x7c] sm:$0xf]
    %v1348 = vld [vmem:[#allocation2 + $0x80] sm:$0xf]
    %v1349 = vld [vmem:[#allocation2 + $0x84] sm:$0xf]
    %v1350 = vld [vmem:[#allocation2 + $0x88] sm:$0xf]
    %v1351 = vld [vmem:[#allocation2 + $0x8c] sm:$0xf]
    %v1352 = vld [vmem:[#allocation2 + $0x90] sm:$0xf]
    %v1353 = vld [vmem:[#allocation2 + $0x94] sm:$0xf]
    %v1354 = vld [vmem:[#allocation2 + $0x98] sm:$0xf]
    %v1355 = vld [vmem:[#allocation2 + $0x9c] sm:$0xf]
    %v1356 = vld [vmem:[#allocation2 + $0xa0] sm:$0xf]
    %v1357 = vld [vmem:[#allocation2 + $0xa4] sm:$0xf]
    %v1358 = vld [vmem:[#allocation2 + $0xa8] sm:$0xf]
    %v1359 = vld [vmem:[#allocation2 + $0xac] sm:$0xf]
    %v1360 = vld [vmem:[#allocation2 + $0xb0] sm:$0xf]
    %v1361 = vld [vmem:[#allocation2 + $0xb4] sm:$0xf]
    %v1362 = vld [vmem:[#allocation2 + $0xb8] sm:$0xf]
    %v1363 = vld [vmem:[#allocation2 + $0xbc] sm:$0xf]
    %v1364 = vld [vmem:[#allocation2 + $0xc0] sm:$0xf]
    %v1365 = vld [vmem:[#allocation2 + $0xc4] sm:$0xf]
    %v1366 = vld [vmem:[#allocation2 + $0xc8] sm:$0xf]
    %v1367 = vld [vmem:[#allocation2 + $0xcc] sm:$0xf]
    %v1368 = vld [vmem:[#allocation2 + $0xd0] sm:$0xf]
    %v1369 = vld [vmem:[#allocation2 + $0xd4] sm:$0xf]
    %v1370 = vld [vmem:[#allocation2 + $0xd8] sm:$0xf]
    %v1371 = vld [vmem:[#allocation2 + $0xdc] sm:$0xf]
    %v1372 = vld [vmem:[#allocation2 + $0xe0] sm:$0xf]
    %v1373 = vld [vmem:[#allocation2 + $0xe4] sm:$0xf]
    %v1374 = vld [vmem:[#allocation2 + $0xe8] sm:$0xf]
    %v1375 = vld [vmem:[#allocation2 + $0xec] sm:$0xf]
    %v1376 = vld [vmem:[#allocation2 + $0xf0] sm:$0xf]
    %v1377 = vld [vmem:[#allocation2 + $0xf4] sm:$0xf]
    %v1378 = vld [vmem:[#allocation2 + $0xf8] sm:$0xf]
    %v1379 = vld [vmem:[#allocation2 + $0xfc] sm:$0xf]
    %v1380 = vld [vmem:[%s6] sm:$0x1]
    %v1382 = vlaneseq
    %v1383 = vshrl.u32 %v1382, 7
    %v1384 = vsub.s32 0, %v1383
    %v1385 = vrot.slane %v1380, %v1384
    %v1451 = vunpack.c.l.b16 %v1316
    %v1452 = vunpack.c.l.b16 %v1317
    %v1453 = vunpack.c.l.b16 %v1318
    %v1454 = vunpack.c.l.b16 %v1319
    %v1455 = vunpack.c.l.b16 %v1320
    %v1456 = vunpack.c.l.b16 %v1321
    %v1457 = vunpack.c.l.b16 %v1322
    %v1458 = vunpack.c.l.b16 %v1323
    %v1459 = vunpack.c.l.b16 %v1324
    %v1460 = vunpack.c.l.b16 %v1325
    %v1461 = vunpack.c.l.b16 %v1326
    %v1462 = vunpack.c.l.b16 %v1327
    %v1463 = vunpack.c.l.b16 %v1328
    %v1464 = vunpack.c.l.b16 %v1329
    %v1465 = vunpack.c.l.b16 %v1330
    %v1466 = vunpack.c.l.b16 %v1331
    %v1467 = vunpack.c.l.b16 %v1332
    %v1468 = vunpack.c.l.b16 %v1333
    %v1469 = vunpack.c.l.b16 %v1334
    %v1470 = vunpack.c.l.b16 %v1335
    %v1471 = vunpack.c.l.b16 %v1336
    %v1472 = vunpack.c.l.b16 %v1337
    %v1473 = vunpack.c.l.b16 %v1338
    %v1474 = vunpack.c.l.b16 %v1339
    %v1475 = vunpack.c.l.b16 %v1340
    %v1476 = vunpack.c.l.b16 %v1341
    %v1477 = vunpack.c.l.b16 %v1342
    %v1478 = vunpack.c.l.b16 %v1343
    %v1479 = vunpack.c.l.b16 %v1344
    %v1480 = vunpack.c.l.b16 %v1345
    %v1481 = vunpack.c.l.b16 %v1346
    %v1482 = vunpack.c.l.b16 %v1347
    %v1483 = vunpack.c.l.b16 %v1348
    %v1484 = vunpack.c.l.b16 %v1349
    %v1485 = vunpack.c.l.b16 %v1350
    %v1486 = vunpack.c.l.b16 %v1351
    %v1487 = vunpack.c.l.b16 %v1352
    %v1488 = vunpack.c.l.b16 %v1353
    %v1489 = vunpack.c.l.b16 %v1354
    %v1490 = vunpack.c.l.b16 %v1355
    %v1491 = vunpack.c.l.b16 %v1356
    %v1492 = vunpack.c.l.b16 %v1357
    %v1493 = vunpack.c.l.b16 %v1358
    %v1494 = vunpack.c.l.b16 %v1359
    %v1495 = vunpack.c.l.b16 %v1360
    %v1496 = vunpack.c.l.b16 %v1361
    %v1497 = vunpack.c.l.b16 %v1362
    %v1498 = vunpack.c.l.b16 %v1363
    %v1499 = vunpack.c.l.b16 %v1364
    %v1500 = vunpack.c.l.b16 %v1365
    %v1501 = vunpack.c.l.b16 %v1366
    %v1502 = vunpack.c.l.b16 %v1367
    %v1503 = vunpack.c.l.b16 %v1368
    %v1504 = vunpack.c.l.b16 %v1369
    %v1505 = vunpack.c.l.b16 %v1370
    %v1506 = vunpack.c.l.b16 %v1371
    %v1507 = vunpack.c.l.b16 %v1372
    %v1508 = vunpack.c.l.b16 %v1373
    %v1509 = vunpack.c.l.b16 %v1374
    %v1510 = vunpack.c.l.b16 %v1375
    %v1511 = vunpack.c.l.b16 %v1376
    %v1512 = vunpack.c.l.b16 %v1377
    %v1513 = vunpack.c.l.b16 %v1378
    %v1514 = vunpack.c.l.b16 %v1379
    %v1515 = vpack.c.b16 %v1452, %v1451
    %v1516 = vpack.c.b16 %v1454, %v1453
    %v1517 = vpack.c.b16 %v1456, %v1455
    %v1518 = vpack.c.b16 %v1458, %v1457
    %v1519 = vpack.c.b16 %v1460, %v1459
    %v1520 = vpack.c.b16 %v1462, %v1461
    %v1521 = vpack.c.b16 %v1464, %v1463
    %v1522 = vpack.c.b16 %v1466, %v1465
    %v1523 = vpack.c.b16 %v1468, %v1467
    %v1524 = vpack.c.b16 %v1470, %v1469
    %v1525 = vpack.c.b16 %v1472, %v1471
    %v1526 = vpack.c.b16 %v1474, %v1473
    %v1527 = vpack.c.b16 %v1476, %v1475
    %v1528 = vpack.c.b16 %v1478, %v1477
    %v1529 = vpack.c.b16 %v1480, %v1479
    %v1530 = vpack.c.b16 %v1482, %v1481
    %v1531 = vpack.c.b16 %v1484, %v1483
    %v1532 = vpack.c.b16 %v1486, %v1485
    %v1533 = vpack.c.b16 %v1488, %v1487
    %v1534 = vpack.c.b16 %v1490, %v1489
    %v1535 = vpack.c.b16 %v1492, %v1491
    %v1536 = vpack.c.b16 %v1494, %v1493
    %v1537 = vpack.c.b16 %v1496, %v1495
    %v1538 = vpack.c.b16 %v1498, %v1497
    %v1539 = vpack.c.b16 %v1500, %v1499
    %v1540 = vpack.c.b16 %v1502, %v1501
    %v1541 = vpack.c.b16 %v1504, %v1503
    %v1542 = vpack.c.b16 %v1506, %v1505
    %v1543 = vpack.c.b16 %v1508, %v1507
    %v1544 = vpack.c.b16 %v1510, %v1509
    %v1545 = vpack.c.b16 %v1512, %v1511
    %v1546 = vpack.c.b16 %v1514, %v1513
    %1579 = vmatprep.subr.bf16.mxu0 0
    %1580 = vmatpush1.bf16.msra.mxu0 %v1515
    %1581 = vmatprep.subr.bf16.mxu0 0
    %1582 = vmatpush1.bf16.msra.mxu0 %v1516
    %1583 = vmatprep.subr.bf16.mxu0 0
    %1584 = vmatpush1.bf16.msra.mxu0 %v1517
    %1585 = vmatprep.subr.bf16.mxu0 0
    %1586 = vmatpush1.bf16.msra.mxu0 %v1518
    %1587 = vmatprep.subr.bf16.mxu0 0
    %1588 = vmatpush1.bf16.msra.mxu0 %v1519
    %1589 = vmatprep.subr.bf16.mxu0 0
    %1590 = vmatpush1.bf16.msra.mxu0 %v1520
    %1591 = vmatprep.subr.bf16.mxu0 0
    %1592 = vmatpush1.bf16.msra.mxu0 %v1521
    %1593 = vmatprep.subr.bf16.mxu0 0
    %1594 = vmatpush1.bf16.msra.mxu0 %v1522
    %1595 = vmatprep.subr.bf16.mxu0 0
    %1596 = vmatpush1.bf16.msra.mxu0 %v1523
    %1597 = vmatprep.subr.bf16.mxu0 0
    %1598 = vmatpush1.bf16.msra.mxu0 %v1524
    %1599 = vmatprep.subr.bf16.mxu0 0
    %1600 = vmatpush1.bf16.msra.mxu0 %v1525
    %1601 = vmatprep.subr.bf16.mxu0 0
    %1602 = vmatpush1.bf16.msra.mxu0 %v1526
    %1603 = vmatprep.subr.bf16.mxu0 0
    %1604 = vmatpush1.bf16.msra.mxu0 %v1527
    %1605 = vmatprep.subr.bf16.mxu0 0
    %1606 = vmatpush1.bf16.msra.mxu0 %v1528
    %1607 = vmatprep.subr.bf16.mxu0 0
    %1608 = vmatpush1.bf16.msra.mxu0 %v1529
    %1609 = vmatprep.subr.bf16.mxu0 0
    %1610 = vmatpush1.bf16.msra.mxu0 %v1530
    %1611 = vmatprep.mubr.bf16.mxu0 %v1241
    %1612 = vmatmul.mubr.bf16.gmra.mrb[0].mxu0 %v1240
    %v1613 = vpop.f32.mrb[0].mxu0
    %v1614 = vadd.f32 %v1385, %v1613
    %v1615 = vpop.f32.mrb[0].mxu0
    %v1616 = vpop.f32.mrb[0].mxu0
    %v1617 = vadd.f32 %v1385, %v1616
    %v1618 = vpop.f32.mrb[0].mxu0
    %1619 = vmatprep.mubr.bf16.mxu0 %v1245
    %1620 = vmatmul.mubr.bf16.gmra.mrb[0].mxu0 %v1244
    %v1621 = vpop.f32.mrb[0].mxu0
    %v1622 = vadd.f32 %v1385, %v1621
    %v1623 = vpop.f32.mrb[0].mxu0
    %v1624 = vpop.f32.mrb[0].mxu0
    %v1625 = vadd.f32 %v1385, %v1624
    %v1626 = vpop.f32.mrb[0].mxu0
    %1627 = vmatprep.mubr.bf16.mxu0 %v1249
    %1628 = vmatmul.mubr.bf16.gmra.mrb[0].mxu0 %v1248
    %v1629 = vpop.f32.mrb[0].mxu0
    %v1630 = vadd.f32 %v1385, %v1629
    %v1631 = vpop.f32.mrb[0].mxu0
    %v1632 = vpop.f32.mrb[0].mxu0
    %v1633 = vadd.f32 %v1385, %v1632
    %v1634 = vpop.f32.mrb[0].mxu0
    %1635 = vmatprep.mubr.bf16.mxu0 %v1253
    %1636 = vmatmul.mubr.bf16.gmra.mrb[0].mxu0 %v1252
    %v1637 = vpop.f32.mrb[0].mxu0
    %v1638 = vadd.f32 %v1385, %v1637
    %v1639 = vpop.f32.mrb[0].mxu0
    %v1640 = vpop.f32.mrb[0].mxu0
    %v1641 = vadd.f32 %v1385, %v1640
    %v1642 = vpop.f32.mrb[0].mxu0
    %1643 = vmatprep.mubr.bf16.mxu0 %v1257
    %1644 = vmatmul.mubr.bf16.gmra.mrb[0].mxu0 %v1256
    %v1645 = vpop.f32.mrb[0].mxu0
    %v1646 = vadd.f32 %v1385, %v1645
    %v1647 = vpop.f32.mrb[0].mxu0
    %v1648 = vpop.f32.mrb[0].mxu0
    %v1649 = vadd.f32 %v1385, %v1648
    %v1650 = vpop.f32.mrb[0].mxu0
    %1651 = vmatprep.mubr.bf16.mxu0 %v1261
    %1652 = vmatmul.mubr.bf16.gmra.mrb[0].mxu0 %v1260
    %v1653 = vpop.f32.mrb[0].mxu0
    %v1654 = vadd.f32 %v1385, %v1653
    %v1655 = vpop.f32.mrb[0].mxu0
    %v1656 = vpop.f32.mrb[0].mxu0
    %v1657 = vadd.f32 %v1385, %v1656
    %v1658 = vpop.f32.mrb[0].mxu0
    %1659 = vmatprep.mubr.bf16.mxu0 %v1265
    %1660 = vmatmul.mubr.bf16.gmra.mrb[0].mxu0 %v1264
    %v1661 = vpop.f32.mrb[0].mxu0
    %v1662 = vadd.f32 %v1385, %v1661
    %v1663 = vpop.f32.mrb[0].mxu0
    %v1664 = vpop.f32.mrb[0].mxu0
    %v1665 = vadd.f32 %v1385, %v1664
    %v1666 = vpop.f32.mrb[0].mxu0
    %1667 = vmatprep.mubr.bf16.mxu0 %v1269
    %1668 = vmatmul.mubr.bf16.gmra.mrb[0].mxu0 %v1268
    %v1669 = vpop.f32.mrb[0].mxu0
    %v1670 = vadd.f32 %v1385, %v1669
    %v1671 = vpop.f32.mrb[0].mxu0
    %v1672 = vpop.f32.mrb[0].mxu0
    %v1673 = vadd.f32 %v1385, %v1672
    %v1674 = vpop.f32.mrb[0].mxu0
    %1675 = vmatprep.mubr.bf16.mxu0 %v1273
    %1676 = vmatmul.mubr.bf16.gmra.mrb[0].mxu0 %v1272
    %v1677 = vpop.f32.mrb[0].mxu0
    %v1678 = vadd.f32 %v1385, %v1677
    %v1679 = vpop.f32.mrb[0].mxu0
    %v1680 = vpop.f32.mrb[0].mxu0
    %v1681 = vadd.f32 %v1385, %v1680
    %v1682 = vpop.f32.mrb[0].mxu0
    %1683 = vmatprep.mubr.bf16.mxu0 %v1277
    %1684 = vmatmul.mubr.bf16.gmra.mrb[0].mxu0 %v1276
    %v1685 = vpop.f32.mrb[0].mxu0
    %v1686 = vadd.f32 %v1385, %v1685
    %v1687 = vpop.f32.mrb[0].mxu0
    %v1688 = vpop.f32.mrb[0].mxu0
    %v1689 = vadd.f32 %v1385, %v1688
    %v1690 = vpop.f32.mrb[0].mxu0
    %1691 = vmatprep.mubr.bf16.mxu0 %v1281
    %1692 = vmatmul.mubr.bf16.gmra.mrb[0].mxu0 %v1280
    %v1693 = vpop.f32.mrb[0].mxu0
    %v1694 = vadd.f32 %v1385, %v1693
    %v1695 = vpop.f32.mrb[0].mxu0
    %v1696 = vpop.f32.mrb[0].mxu0
    %v1697 = vadd.f32 %v1385, %v1696
    %v1698 = vpop.f32.mrb[0].mxu0
    %1699 = vmatprep.mubr.bf16.mxu0 %v1285
    %1700 = vmatmul.mubr.bf16.gmra.mrb[0].mxu0 %v1284
    %v1701 = vpop.f32.mrb[0].mxu0
    %v1702 = vadd.f32 %v1385, %v1701
    %v1703 = vpop.f32.mrb[0].mxu0
    %v1704 = vpop.f32.mrb[0].mxu0
    %v1705 = vadd.f32 %v1385, %v1704
    %v1706 = vpop.f32.mrb[0].mxu0
    %1707 = vmatprep.mubr.bf16.mxu0 %v1289
    %1708 = vmatmul.mubr.bf16.gmra.mrb[0].mxu0 %v1288
    %v1709 = vpop.f32.mrb[0].mxu0
    %v1710 = vadd.f32 %v1385, %v1709
    %v1711 = vpop.f32.mrb[0].mxu0
    %v1712 = vpop.f32.mrb[0].mxu0
    %v1713 = vadd.f32 %v1385, %v1712
    %v1714 = vpop.f32.mrb[0].mxu0
    %1715 = vmatprep.mubr.bf16.mxu0 %v1293
    %1716 = vmatmul.mubr.bf16.gmra.mrb[0].mxu0 %v1292
    %v1717 = vpop.f32.mrb[0].mxu0
    %v1718 = vadd.f32 %v1385, %v1717
    %v1719 = vpop.f32.mrb[0].mxu0
    %v1720 = vpop.f32.mrb[0].mxu0
    %v1721 = vadd.f32 %v1385, %v1720
    %v1722 = vpop.f32.mrb[0].mxu0
    %1723 = vmatprep.mubr.bf16.mxu0 %v1297
    %1724 = vmatmul.mubr.bf16.gmra.mrb[0].mxu0 %v1296
    %v1725 = vpop.f32.mrb[0].mxu0
    %v1726 = vadd.f32 %v1385, %v1725
    %v1727 = vpop.f32.mrb[0].mxu0
    %v1728 = vpop.f32.mrb[0].mxu0
    %v1729 = vadd.f32 %v1385, %v1728
    %v1730 = vpop.f32.mrb[0].mxu0
    %1731 = vmatprep.mubr.bf16.mxu0 %v1301
    %1732 = vmatmul.mubr.bf16.gmra.mrb[0].mxu0 %v1300
    %v1733 = vpop.f32.mrb[0].mxu0
    %v1734 = vadd.f32 %v1385, %v1733
    %v1735 = vpop.f32.mrb[0].mxu0
    %v1736 = vpop.f32.mrb[0].mxu0
    %v1737 = vadd.f32 %v1385, %v1736
    %v1738 = vpop.f32.mrb[0].mxu0
    %1739 = vmatprep.mubr.bf16.mxu0 %v1305
    %1740 = vmatmul.mubr.bf16.gmra.mrb[0].mxu0 %v1304
    %v1741 = vpop.f32.mrb[0].mxu0
    %v1742 = vadd.f32 %v1385, %v1741
    %v1743 = vpop.f32.mrb[0].mxu0
    %v1744 = vpop.f32.mrb[0].mxu0
    %v1745 = vadd.f32 %v1385, %v1744
    %v1746 = vpop.f32.mrb[0].mxu0
    %1747 = vmatprep.mubr.bf16.mxu0 %v1309
    %1748 = vmatmul.mubr.bf16.gmra.mrb[0].mxu0 %v1308
    %v1749 = vpop.f32.mrb[0].mxu0
    %v1750 = vadd.f32 %v1385, %v1749
    %v1751 = vpop.f32.mrb[0].mxu0
    %v1752 = vpop.f32.mrb[0].mxu0
    %v1753 = vadd.f32 %v1385, %v1752
    %v1754 = vpop.f32.mrb[0].mxu0
    %1755 = vmatprep.mubr.bf16.mxu0 %v1313
    %1756 = vmatmul.mubr.bf16.gmra.mrb[0].mxu0 %v1312
    %v1757 = vpop.f32.mrb[0].mxu0
    %v1758 = vadd.f32 %v1385, %v1757
    %v1759 = vpop.f32.mrb[0].mxu0
    %v1760 = vpop.f32.mrb[0].mxu0
    %v1761 = vadd.f32 %v1385, %v1760
    %v1762 = vpop.f32.mrb[0].mxu0
    %1763 = vdwg.mxu0
    %1764 = vmatprep.subr.bf16.mxu0 0
    %1765 = vmatpush1.bf16.msra.mxu0 %v1531
    %1766 = vmatprep.subr.bf16.mxu0 0
    %1767 = vmatpush1.bf16.msra.mxu0 %v1532
    %1768 = vmatprep.subr.bf16.mxu0 0
    %1769 = vmatpush1.bf16.msra.mxu0 %v1533
    %1770 = vmatprep.subr.bf16.mxu0 0
    %1771 = vmatpush1.bf16.msra.mxu0 %v1534
    %1772 = vmatprep.subr.bf16.mxu0 0
    %1773 = vmatpush1.bf16.msra.mxu0 %v1535
    %1774 = vmatprep.subr.bf16.mxu0 0
    %1775 = vmatpush1.bf16.msra.mxu0 %v1536
    %1776 = vmatprep.subr.bf16.mxu0 0
    %1777 = vmatpush1.bf16.msra.mxu0 %v1537
    %1778 = vmatprep.subr.bf16.mxu0 0
    %1779 = vmatpush1.bf16.msra.mxu0 %v1538
    %1780 = vmatprep.subr.bf16.mxu0 0
    %1781 = vmatpush1.bf16.msra.mxu0 %v1539
    %1782 = vmatprep.subr.bf16.mxu0 0
    %1783 = vmatpush1.bf16.msra.mxu0 %v1540
    %1784 = vmatprep.subr.bf16.mxu0 0
    %1785 = vmatpush1.bf16.msra.mxu0 %v1541
    %1786 = vmatprep.subr.bf16.mxu0 0
    %1787 = vmatpush1.bf16.msra.mxu0 %v1542
    %1788 = vmatprep.subr.bf16.mxu0 0
    %1789 = vmatpush1.bf16.msra.mxu0 %v1543
    %1790 = vmatprep.subr.bf16.mxu0 0
    %1791 = vmatpush1.bf16.msra.mxu0 %v1544
    %1792 = vmatprep.subr.bf16.mxu0 0
    %1793 = vmatpush1.bf16.msra.mxu0 %v1545
    %1794 = vmatprep.subr.bf16.mxu0 0
    %1795 = vmatpush1.bf16.msra.mxu0 %v1546
    %1796 = vmatprep.mubr.bf16.mxu0 %v1243
    %1797 = vmatmul.mubr.bf16.gmra.mrb[0].mxu0 %v1242
    %v1798 = vpop.f32.mrb[0].mxu0
    %v1799 = vadd.f32 %v1614, %v1798
    %v1800 = vpop.f32.mrb[0].mxu0
    %v1801 = vpop.f32.mrb[0].mxu0
    %v1802 = vadd.f32 %v1617, %v1801
    %v1803 = vpop.f32.mrb[0].mxu0
    %1804 = vmatprep.mubr.bf16.mxu0 %v1247
    %1805 = vmatmul.mubr.bf16.gmra.mrb[0].mxu0 %v1246
    %v1806 = vpop.f32.mrb[0].mxu0
    %v1807 = vadd.f32 %v1622, %v1806
    %v1808 = vpop.f32.mrb[0].mxu0
    %v1809 = vpop.f32.mrb[0].mxu0
    %v1810 = vadd.f32 %v1625, %v1809
    %v1811 = vpop.f32.mrb[0].mxu0
    %1812 = vmatprep.mubr.bf16.mxu0 %v1251
    %1813 = vmatmul.mubr.bf16.gmra.mrb[0].mxu0 %v1250
    %v1814 = vpop.f32.mrb[0].mxu0
    %v1815 = vadd.f32 %v1630, %v1814
    %v1816 = vpop.f32.mrb[0].mxu0
    %v1817 = vpop.f32.mrb[0].mxu0
    %v1818 = vadd.f32 %v1633, %v1817
    %v1819 = vpop.f32.mrb[0].mxu0
    %1820 = vmatprep.mubr.bf16.mxu0 %v1255
    %1821 = vmatmul.mubr.bf16.gmra.mrb[0].mxu0 %v1254
    %v1822 = vpop.f32.mrb[0].mxu0
    %v1823 = vadd.f32 %v1638, %v1822
    %v1824 = vpop.f32.mrb[0].mxu0
    %v1825 = vpop.f32.mrb[0].mxu0
    %v1826 = vadd.f32 %v1641, %v1825
    %v1827 = vpop.f32.mrb[0].mxu0
    %1828 = vmatprep.mubr.bf16.mxu0 %v1259
    %1829 = vmatmul.mubr.bf16.gmra.mrb[0].mxu0 %v1258
    %v1830 = vpop.f32.mrb[0].mxu0
    %v1831 = vadd.f32 %v1646, %v1830
    %v1832 = vpop.f32.mrb[0].mxu0
    %v1833 = vpop.f32.mrb[0].mxu0
    %v1834 = vadd.f32 %v1649, %v1833
    %v1835 = vpop.f32.mrb[0].mxu0
    %1836 = vmatprep.mubr.bf16.mxu0 %v1263
    %1837 = vmatmul.mubr.bf16.gmra.mrb[0].mxu0 %v1262
    %v1838 = vpop.f32.mrb[0].mxu0
    %v1839 = vadd.f32 %v1654, %v1838
    %v1840 = vpop.f32.mrb[0].mxu0
    %v1841 = vpop.f32.mrb[0].mxu0
    %v1842 = vadd.f32 %v1657, %v1841
    %v1843 = vpop.f32.mrb[0].mxu0
    %1844 = vmatprep.mubr.bf16.mxu0 %v1267
    %1845 = vmatmul.mubr.bf16.gmra.mrb[0].mxu0 %v1266
    %v1846 = vpop.f32.mrb[0].mxu0
    %v1847 = vadd.f32 %v1662, %v1846
    %v1848 = vpop.f32.mrb[0].mxu0
    %v1849 = vpop.f32.mrb[0].mxu0
    %v1850 = vadd.f32 %v1665, %v1849
    %v1851 = vpop.f32.mrb[0].mxu0
    %1852 = vmatprep.mubr.bf16.mxu0 %v1271
    %1853 = vmatmul.mubr.bf16.gmra.mrb[0].mxu0 %v1270
    %v1854 = vpop.f32.mrb[0].mxu0
    %v1855 = vadd.f32 %v1670, %v1854
    %v1856 = vpop.f32.mrb[0].mxu0
    %v1857 = vpop.f32.mrb[0].mxu0
    %v1858 = vadd.f32 %v1673, %v1857
    %v1859 = vpop.f32.mrb[0].mxu0
    %1860 = vmatprep.mubr.bf16.mxu0 %v1275
    %1861 = vmatmul.mubr.bf16.gmra.mrb[0].mxu0 %v1274
    %v1862 = vpop.f32.mrb[0].mxu0
    %v1863 = vadd.f32 %v1678, %v1862
    %v1864 = vpop.f32.mrb[0].mxu0
    %v1865 = vpop.f32.mrb[0].mxu0
    %v1866 = vadd.f32 %v1681, %v1865
    %v1867 = vpop.f32.mrb[0].mxu0
    %1868 = vmatprep.mubr.bf16.mxu0 %v1279
    %1869 = vmatmul.mubr.bf16.gmra.mrb[0].mxu0 %v1278
    %v1870 = vpop.f32.mrb[0].mxu0
    %v1871 = vadd.f32 %v1686, %v1870
    %v1872 = vpop.f32.mrb[0].mxu0
    %v1873 = vpop.f32.mrb[0].mxu0
    %v1874 = vadd.f32 %v1689, %v1873
    %v1875 = vpop.f32.mrb[0].mxu0
    %1876 = vmatprep.mubr.bf16.mxu0 %v1283
    %1877 = vmatmul.mubr.bf16.gmra.mrb[0].mxu0 %v1282
    %v1878 = vpop.f32.mrb[0].mxu0
    %v1879 = vadd.f32 %v1694, %v1878
    %v1880 = vpop.f32.mrb[0].mxu0
    %v1881 = vpop.f32.mrb[0].mxu0
    %v1882 = vadd.f32 %v1697, %v1881
    %v1883 = vpop.f32.mrb[0].mxu0
    %1884 = vmatprep.mubr.bf16.mxu0 %v1287
    %1885 = vmatmul.mubr.bf16.gmra.mrb[0].mxu0 %v1286
    %v1886 = vpop.f32.mrb[0].mxu0
    %v1887 = vadd.f32 %v1702, %v1886
    %v1888 = vpop.f32.mrb[0].mxu0
    %v1889 = vpop.f32.mrb[0].mxu0
    %v1890 = vadd.f32 %v1705, %v1889
    %v1891 = vpop.f32.mrb[0].mxu0
    %1892 = vmatprep.mubr.bf16.mxu0 %v1291
    %1893 = vmatmul.mubr.bf16.gmra.mrb[0].mxu0 %v1290
    %v1894 = vpop.f32.mrb[0].mxu0
    %v1895 = vadd.f32 %v1710, %v1894
    %v1896 = vpop.f32.mrb[0].mxu0
    %v1897 = vpop.f32.mrb[0].mxu0
    %v1898 = vadd.f32 %v1713, %v1897
    %v1899 = vpop.f32.mrb[0].mxu0
    %1900 = vmatprep.mubr.bf16.mxu0 %v1295
    %1901 = vmatmul.mubr.bf16.gmra.mrb[0].mxu0 %v1294
    %v1902 = vpop.f32.mrb[0].mxu0
    %v1903 = vadd.f32 %v1718, %v1902
    %v1904 = vpop.f32.mrb[0].mxu0
    %v1905 = vpop.f32.mrb[0].mxu0
    %v1906 = vadd.f32 %v1721, %v1905
    %v1907 = vpop.f32.mrb[0].mxu0
    %1908 = vmatprep.mubr.bf16.mxu0 %v1299
    %1909 = vmatmul.mubr.bf16.gmra.mrb[0].mxu0 %v1298
    %v1910 = vpop.f32.mrb[0].mxu0
    %v1911 = vadd.f32 %v1726, %v1910
    %v1912 = vpop.f32.mrb[0].mxu0
    %v1913 = vpop.f32.mrb[0].mxu0
    %v1914 = vadd.f32 %v1729, %v1913
    %v1915 = vpop.f32.mrb[0].mxu0
    %1916 = vmatprep.mubr.bf16.mxu0 %v1303
    %1917 = vmatmul.mubr.bf16.gmra.mrb[0].mxu0 %v1302
    %v1918 = vpop.f32.mrb[0].mxu0
    %v1919 = vadd.f32 %v1734, %v1918
    %v1920 = vpop.f32.mrb[0].mxu0
    %v1921 = vpop.f32.mrb[0].mxu0
    %v1922 = vadd.f32 %v1737, %v1921
    %v1923 = vpop.f32.mrb[0].mxu0
    %1924 = vmatprep.mubr.bf16.mxu0 %v1307
    %1925 = vmatmul.mubr.bf16.gmra.mrb[0].mxu0 %v1306
    %v1926 = vpop.f32.mrb[0].mxu0
    %v1927 = vadd.f32 %v1742, %v1926
    %v1928 = vpop.f32.mrb[0].mxu0
    %v1929 = vpop.f32.mrb[0].mxu0
    %v1930 = vadd.f32 %v1745, %v1929
    %v1931 = vpop.f32.mrb[0].mxu0
    %1932 = vmatprep.mubr.bf16.mxu0 %v1311
    %1933 = vmatmul.mubr.bf16.gmra.mrb[0].mxu0 %v1310
    %v1934 = vpop.f32.mrb[0].mxu0
    %v1935 = vadd.f32 %v1750, %v1934
    %v1936 = vpop.f32.mrb[0].mxu0
    %v1937 = vpop.f32.mrb[0].mxu0
    %v1938 = vadd.f32 %v1753, %v1937
    %v1939 = vpop.f32.mrb[0].mxu0
    %1940 = vmatprep.mubr.bf16.mxu0 %v1315
    %1941 = vmatmul.mubr.bf16.gmra.mrb[0].mxu0 %v1314
    %v1942 = vpop.f32.mrb[0].mxu0
    %v1943 = vadd.f32 %v1758, %v1942
    %v1944 = vpop.f32.mrb[0].mxu0
    %v1945 = vpop.f32.mrb[0].mxu0
    %v1946 = vadd.f32 %v1761, %v1945
    %v1947 = vpop.f32.mrb[0].mxu0
    %1948 = vdwg.mxu0
    %v1949 = vmax.f32 %v1799, 0.0
    %v1950 = vmax.f32 %v1802, 0.0
    %v1951 = vmax.f32 %v1807, 0.0
    %v1952 = vmax.f32 %v1810, 0.0
    %v1953 = vmax.f32 %v1815, 0.0
    %v1954 = vmax.f32 %v1818, 0.0
    %v1955 = vmax.f32 %v1823, 0.0
    %v1956 = vmax.f32 %v1826, 0.0
    %v1957 = vmax.f32 %v1831, 0.0
    %v1958 = vmax.f32 %v1834, 0.0
    %v1959 = vmax.f32 %v1839, 0.0
    %v1960 = vmax.f32 %v1842, 0.0
    %v1961 = vmax.f32 %v1847, 0.0
    %v1962 = vmax.f32 %v1850, 0.0
    %v1963 = vmax.f32 %v1855, 0.0
    %v1964 = vmax.f32 %v1858, 0.0
    %v1965 = vmax.f32 %v1863, 0.0
    %v1966 = vmax.f32 %v1866, 0.0
    %v1967 = vmax.f32 %v1871, 0.0
    %v1968 = vmax.f32 %v1874, 0.0
    %v1969 = vmax.f32 %v1879, 0.0
    %v1970 = vmax.f32 %v1882, 0.0
    %v1971 = vmax.f32 %v1887, 0.0
    %v1972 = vmax.f32 %v1890, 0.0
    %v1973 = vmax.f32 %v1895, 0.0
    %v1974 = vmax.f32 %v1898, 0.0
    %v1975 = vmax.f32 %v1903, 0.0
    %v1976 = vmax.f32 %v1906, 0.0
    %v1977 = vmax.f32 %v1911, 0.0
    %v1978 = vmax.f32 %v1914, 0.0
    %v1979 = vmax.f32 %v1919, 0.0
    %v1980 = vmax.f32 %v1922, 0.0
    %v1981 = vmax.f32 %v1927, 0.0
    %v1982 = vmax.f32 %v1930, 0.0
    %v1983 = vmax.f32 %v1935, 0.0
    %v1984 = vmax.f32 %v1938, 0.0
    %v1985 = vmax.f32 %v1943, 0.0
    %v1986 = vmax.f32 %v1946, 0.0
    %v1987 = vpack.c.bf16 %v1950, %v1949
    %v1988 = vpack.c.bf16 %v1952, %v1951
    %v1989 = vpack.c.bf16 %v1954, %v1953
    %v1990 = vpack.c.bf16 %v1956, %v1955
    %v1991 = vpack.c.bf16 %v1958, %v1957
    %v1992 = vpack.c.bf16 %v1960, %v1959
    %v1993 = vpack.c.bf16 %v1962, %v1961
    %v1994 = vpack.c.bf16 %v1964, %v1963
    %v1995 = vpack.c.bf16 %v1966, %v1965
    %v1996 = vpack.c.bf16 %v1968, %v1967
    %v1997 = vpack.c.bf16 %v1970, %v1969
    %v1998 = vpack.c.bf16 %v1972, %v1971
    %v1999 = vpack.c.bf16 %v1974, %v1973
    %v2000 = vpack.c.bf16 %v1976, %v1975
    %v2001 = vpack.c.bf16 %v1978, %v1977
    %v2002 = vpack.c.bf16 %v1980, %v1979
    %v2003 = vpack.c.bf16 %v1982, %v1981
    %v2004 = vpack.c.bf16 %v1984, %v1983
    %v2005 = vpack.c.bf16 %v1986, %v1985
    %v2006 = vld [vmem:[%s7] sm:$0xf]
    %v2007 = vld [vmem:[%s7 + $0x4] sm:$0xf]
    %v2008 = vld [vmem:[%s7 + $0x8] sm:$0xf]
    %v2009 = vld [vmem:[%s7 + $0xc] sm:$0xf]
    %v2010 = vld [vmem:[%s7 + $0x10] sm:$0xf]
    %v2011 = vld [vmem:[%s7 + $0x14] sm:$0xf]
    %v2012 = vld [vmem:[%s7 + $0x18] sm:$0xf]
    %v2013 = vld [vmem:[%s7 + $0x1c] sm:$0xf]
    %v2014 = vld [vmem:[%s7 + $0x20] sm:$0xf]
    %v2015 = vld [vmem:[%s7 + $0x24] sm:$0xf]
    %v2016 = vld [vmem:[%s7 + $0x28] sm:$0xf]
    %v2017 = vld [vmem:[%s7 + $0x2c] sm:$0xf]
    %v2018 = vld [vmem:[%s7 + $0x30] sm:$0xf]
    %v2019 = vld [vmem:[%s7 + $0x34] sm:$0xf]
    %v2020 = vld [vmem:[%s7 + $0x38] sm:$0xf]
    %v2021 = vld [vmem:[%s7 + $0x3c] sm:$0xf]
    %v2022 = vld [vmem:[%s8] sm:$0x1]
    %v2024 = vlaneseq
    %v2025 = vshrl.u32 %v2024, 7
    %v2026 = vsub.s32 0, %v2025
    %v2027 = vrot.slane %v2022, %v2026
    %v2045 = vunpack.c.l.b16 %v2006
    %v2046 = vunpack.c.l.b16 %v2007
    %v2047 = vunpack.c.l.b16 %v2008
    %v2048 = vunpack.c.l.b16 %v2009
    %v2049 = vunpack.c.l.b16 %v2010
    %v2050 = vunpack.c.l.b16 %v2011
    %v2051 = vunpack.c.l.b16 %v2012
    %v2052 = vunpack.c.l.b16 %v2013
    %v2053 = vunpack.c.l.b16 %v2014
    %v2054 = vunpack.c.l.b16 %v2015
    %v2055 = vunpack.c.l.b16 %v2016
    %v2056 = vunpack.c.l.b16 %v2017
    %v2057 = vunpack.c.l.b16 %v2018
    %v2058 = vunpack.c.l.b16 %v2019
    %v2059 = vunpack.c.l.b16 %v2020
    %v2060 = vunpack.c.l.b16 %v2021
    %v2061 = vpack.c.b16 %v2046, %v2045
    %v2062 = vpack.c.b16 %v2048, %v2047
    %v2063 = vpack.c.b16 %v2050, %v2049
    %v2064 = vpack.c.b16 %v2052, %v2051
    %v2065 = vpack.c.b16 %v2054, %v2053
    %v2066 = vpack.c.b16 %v2056, %v2055
    %v2067 = vpack.c.b16 %v2058, %v2057
    %v2068 = vpack.c.b16 %v2060, %v2059
    %2077 = vmatprep.subr.bf16.mxu0 0
    %2078 = vmatpush1.bf16.msra.mxu0 %v2061
    %2079 = vmatprep.subr.bf16.mxu0 0
    %2080 = vmatpush1.bf16.msra.mxu0 %v2062
    %2081 = vmatprep.subr.bf16.mxu0 0
    %2082 = vmatpush1.bf16.msra.mxu0 %v2063
    %2083 = vmatprep.subr.bf16.mxu0 0
    %2084 = vmatpush1.bf16.msra.mxu0 %v2064
    %2085 = vmatprep.subr.bf16.mxu0 0
    %2086 = vmatpush1.bf16.msra.mxu0 %v2065
    %2087 = vmatprep.subr.bf16.mxu0 0
    %2088 = vmatpush1.bf16.msra.mxu0 %v2066
    %2089 = vmatprep.subr.bf16.mxu0 0
    %2090 = vmatpush1.bf16.msra.mxu0 %v2067
    %2091 = vmatprep.subr.bf16.mxu0 0
    %2092 = vmatpush1.bf16.msra.mxu0 %v2068
    %2093 = vmatprep.subr.bf16.mxu0 0
    %2094 = vmatpush1.bf16.msra.mxu0 0
    %2095 = vmatprep.subr.bf16.mxu0 0
    %2096 = vmatpush1.bf16.msra.mxu0 0
    %2097 = vmatprep.subr.bf16.mxu0 0
    %2098 = vmatpush1.bf16.msra.mxu0 0
    %2099 = vmatprep.subr.bf16.mxu0 0
    %2100 = vmatpush1.bf16.msra.mxu0 0
    %2101 = vmatprep.subr.bf16.mxu0 0
    %2102 = vmatpush1.bf16.msra.mxu0 0
    %2103 = vmatprep.subr.bf16.mxu0 0
    %2104 = vmatpush1.bf16.msra.mxu0 0
    %2105 = vmatprep.subr.bf16.mxu0 0
    %2106 = vmatpush1.bf16.msra.mxu0 0
    %2107 = vmatprep.subr.bf16.mxu0 0
    %2108 = vmatpush1.bf16.msra.mxu0 0
    %2109 = vmatprep.mubr.bf16.mxu0 0
    %2110 = vmatmul.mubr.bf16.gmra.mrb[0].mxu0 %v1987
    %v2111 = vpop.f32.mrb[0].mxu0
    %v2112 = vadd.f32 %v2027, %v2111
    %v2113 = vpop.f32.mrb[0].mxu0
    %v2114 = vpop.f32.mrb[0].mxu0
    %v2115 = vadd.f32 %v2027, %v2114
    %v2116 = vpop.f32.mrb[0].mxu0
    %2117 = vmatprep.mubr.bf16.mxu0 0
    %2118 = vmatmul.mubr.bf16.gmra.mrb[0].mxu0 %v1988
    %v2119 = vpop.f32.mrb[0].mxu0
    %v2120 = vadd.f32 %v2027, %v2119
    %v2121 = vpop.f32.mrb[0].mxu0
    %v2122 = vpop.f32.mrb[0].mxu0
    %v2123 = vadd.f32 %v2027, %v2122
    %v2124 = vpop.f32.mrb[0].mxu0
    %2125 = vmatprep.mubr.bf16.mxu0 0
    %2126 = vmatmul.mubr.bf16.gmra.mrb[0].mxu0 %v1989
    %v2127 = vpop.f32.mrb[0].mxu0
    %v2128 = vadd.f32 %v2027, %v2127
    %v2129 = vpop.f32.mrb[0].mxu0
    %v2130 = vpop.f32.mrb[0].mxu0
    %v2131 = vadd.f32 %v2027, %v2130
    %v2132 = vpop.f32.mrb[0].mxu0
    %2133 = vmatprep.mubr.bf16.mxu0 0
    %2134 = vmatmul.mubr.bf16.gmra.mrb[0].mxu0 %v1990
    %v2135 = vpop.f32.mrb[0].mxu0
    %v2136 = vadd.f32 %v2027, %v2135
    %v2137 = vpop.f32.mrb[0].mxu0
    %v2138 = vpop.f32.mrb[0].mxu0
    %v2139 = vadd.f32 %v2027, %v2138
    %v2140 = vpop.f32.mrb[0].mxu0
    %2141 = vmatprep.mubr.bf16.mxu0 0
    %2142 = vmatmul.mubr.bf16.gmra.mrb[0].mxu0 %v1991
    %v2143 = vpop.f32.mrb[0].mxu0
    %v2144 = vadd.f32 %v2027, %v2143
    %v2145 = vpop.f32.mrb[0].mxu0
    %v2146 = vpop.f32.mrb[0].mxu0
    %v2147 = vadd.f32 %v2027, %v2146
    %v2148 = vpop.f32.mrb[0].mxu0
    %2149 = vmatprep.mubr.bf16.mxu0 0
    %2150 = vmatmul.mubr.bf16.gmra.mrb[0].mxu0 %v1992
    %v2151 = vpop.f32.mrb[0].mxu0
    %v2152 = vadd.f32 %v2027, %v2151
    %v2153 = vpop.f32.mrb[0].mxu0
    %v2154 = vpop.f32.mrb[0].mxu0
    %v2155 = vadd.f32 %v2027, %v2154
    %v2156 = vpop.f32.mrb[0].mxu0
    %2157 = vmatprep.mubr.bf16.mxu0 0
    %2158 = vmatmul.mubr.bf16.gmra.mrb[0].mxu0 %v1993
    %v2159 = vpop.f32.mrb[0].mxu0
    %v2160 = vadd.f32 %v2027, %v2159
    %v2161 = vpop.f32.mrb[0].mxu0
    %v2162 = vpop.f32.mrb[0].mxu0
    %v2163 = vadd.f32 %v2027, %v2162
    %v2164 = vpop.f32.mrb[0].mxu0
    %2165 = vmatprep.mubr.bf16.mxu0 0
    %2166 = vmatmul.mubr.bf16.gmra.mrb[0].mxu0 %v1994
    %v2167 = vpop.f32.mrb[0].mxu0
    %v2168 = vadd.f32 %v2027, %v2167
    %v2169 = vpop.f32.mrb[0].mxu0
    %v2170 = vpop.f32.mrb[0].mxu0
    %v2171 = vadd.f32 %v2027, %v2170
    %v2172 = vpop.f32.mrb[0].mxu0
    %2173 = vmatprep.mubr.bf16.mxu0 0
    %2174 = vmatmul.mubr.bf16.gmra.mrb[0].mxu0 %v1995
    %v2175 = vpop.f32.mrb[0].mxu0
    %v2176 = vadd.f32 %v2027, %v2175
    %v2177 = vpop.f32.mrb[0].mxu0
    %v2178 = vpop.f32.mrb[0].mxu0
    %v2179 = vadd.f32 %v2027, %v2178
    %v2180 = vpop.f32.mrb[0].mxu0
    %2181 = vmatprep.mubr.bf16.mxu0 0
    %2182 = vmatmul.mubr.bf16.gmra.mrb[0].mxu0 %v1996
    %v2183 = vpop.f32.mrb[0].mxu0
    %v2184 = vadd.f32 %v2027, %v2183
    %v2185 = vpop.f32.mrb[0].mxu0
    %v2186 = vpop.f32.mrb[0].mxu0
    %v2187 = vadd.f32 %v2027, %v2186
    %v2188 = vpop.f32.mrb[0].mxu0
    %2189 = vmatprep.mubr.bf16.mxu0 0
    %2190 = vmatmul.mubr.bf16.gmra.mrb[0].mxu0 %v1997
    %v2191 = vpop.f32.mrb[0].mxu0
    %v2192 = vadd.f32 %v2027, %v2191
    %v2193 = vpop.f32.mrb[0].mxu0
    %v2194 = vpop.f32.mrb[0].mxu0
    %v2195 = vadd.f32 %v2027, %v2194
    %v2196 = vpop.f32.mrb[0].mxu0
    %2197 = vmatprep.mubr.bf16.mxu0 0
    %2198 = vmatmul.mubr.bf16.gmra.mrb[0].mxu0 %v1998
    %v2199 = vpop.f32.mrb[0].mxu0
    %v2200 = vadd.f32 %v2027, %v2199
    %v2201 = vpop.f32.mrb[0].mxu0
    %v2202 = vpop.f32.mrb[0].mxu0
    %v2203 = vadd.f32 %v2027, %v2202
    %v2204 = vpop.f32.mrb[0].mxu0
    %2205 = vmatprep.mubr.bf16.mxu0 0
    %2206 = vmatmul.mubr.bf16.gmra.mrb[0].mxu0 %v1999
    %v2207 = vpop.f32.mrb[0].mxu0
    %v2208 = vadd.f32 %v2027, %v2207
    %v2209 = vpop.f32.mrb[0].mxu0
    %v2210 = vpop.f32.mrb[0].mxu0
    %v2211 = vadd.f32 %v2027, %v2210
    %v2212 = vpop.f32.mrb[0].mxu0
    %2213 = vmatprep.mubr.bf16.mxu0 0
    %2214 = vmatmul.mubr.bf16.gmra.mrb[0].mxu0 %v2000
    %v2215 = vpop.f32.mrb[0].mxu0
    %v2216 = vadd.f32 %v2027, %v2215
    %v2217 = vpop.f32.mrb[0].mxu0
    %v2218 = vpop.f32.mrb[0].mxu0
    %v2219 = vadd.f32 %v2027, %v2218
    %v2220 = vpop.f32.mrb[0].mxu0
    %2221 = vmatprep.mubr.bf16.mxu0 0
    %2222 = vmatmul.mubr.bf16.gmra.mrb[0].mxu0 %v2001
    %v2223 = vpop.f32.mrb[0].mxu0
    %v2224 = vadd.f32 %v2027, %v2223
    %v2225 = vpop.f32.mrb[0].mxu0
    %v2226 = vpop.f32.mrb[0].mxu0
    %v2227 = vadd.f32 %v2027, %v2226
    %v2228 = vpop.f32.mrb[0].mxu0
    %2229 = vmatprep.mubr.bf16.mxu0 0
    %2230 = vmatmul.mubr.bf16.gmra.mrb[0].mxu0 %v2002
    %v2231 = vpop.f32.mrb[0].mxu0
    %v2232 = vadd.f32 %v2027, %v2231
    %v2233 = vpop.f32.mrb[0].mxu0
    %v2234 = vpop.f32.mrb[0].mxu0
    %v2235 = vadd.f32 %v2027, %v2234
    %v2236 = vpop.f32.mrb[0].mxu0
    %2237 = vmatprep.mubr.bf16.mxu0 0
    %2238 = vmatmul.mubr.bf16.gmra.mrb[0].mxu0 %v2003
    %v2239 = vpop.f32.mrb[0].mxu0
    %v2240 = vadd.f32 %v2027, %v2239
    %v2241 = vpop.f32.mrb[0].mxu0
    %v2242 = vpop.f32.mrb[0].mxu0
    %v2243 = vadd.f32 %v2027, %v2242
    %v2244 = vpop.f32.mrb[0].mxu0
    %2245 = vmatprep.mubr.bf16.mxu0 0
    %2246 = vmatmul.mubr.bf16.gmra.mrb[0].mxu0 %v2004
    %v2247 = vpop.f32.mrb[0].mxu0
    %v2248 = vadd.f32 %v2027, %v2247
    %v2249 = vpop.f32.mrb[0].mxu0
    %v2250 = vpop.f32.mrb[0].mxu0
    %v2251 = vadd.f32 %v2027, %v2250
    %v2252 = vpop.f32.mrb[0].mxu0
    %2253 = vmatprep.mubr.bf16.mxu0 0
    %2254 = vmatmul.mubr.bf16.gmra.mrb[0].mxu0 %v2005
    %v2255 = vpop.f32.mrb[0].mxu0
    %v2256 = vadd.f32 %v2027, %v2255
    %v2257 = vpop.f32.mrb[0].mxu0
    %v2258 = vpop.f32.mrb[0].mxu0
    %v2259 = vadd.f32 %v2027, %v2258
    %v2260 = vpop.f32.mrb[0].mxu0
    %2261 = vdwg.mxu0
    %v2262 = vmax.f32 %v2112, 0.0
    %v2263 = vmax.f32 %v2115, 0.0
    %v2264 = vmax.f32 %v2120, 0.0
    %v2265 = vmax.f32 %v2123, 0.0
    %v2266 = vmax.f32 %v2128, 0.0
    %v2267 = vmax.f32 %v2131, 0.0
    %v2268 = vmax.f32 %v2136, 0.0
    %v2269 = vmax.f32 %v2139, 0.0
    %v2270 = vmax.f32 %v2144, 0.0
    %v2271 = vmax.f32 %v2147, 0.0
    %v2272 = vmax.f32 %v2152, 0.0
    %v2273 = vmax.f32 %v2155, 0.0
    %v2274 = vmax.f32 %v2160, 0.0
    %v2275 = vmax.f32 %v2163, 0.0
    %v2276 = vmax.f32 %v2168, 0.0
    %v2277 = vmax.f32 %v2171, 0.0
    %v2278 = vmax.f32 %v2176, 0.0
    %v2279 = vmax.f32 %v2179, 0.0
    %v2280 = vmax.f32 %v2184, 0.0
    %v2281 = vmax.f32 %v2187, 0.0
    %v2282 = vmax.f32 %v2192, 0.0
    %v2283 = vmax.f32 %v2195, 0.0
    %v2284 = vmax.f32 %v2200, 0.0
    %v2285 = vmax.f32 %v2203, 0.0
    %v2286 = vmax.f32 %v2208, 0.0
    %v2287 = vmax.f32 %v2211, 0.0
    %v2288 = vmax.f32 %v2216, 0.0
    %v2289 = vmax.f32 %v2219, 0.0
    %v2290 = vmax.f32 %v2224, 0.0
    %v2291 = vmax.f32 %v2227, 0.0
    %v2292 = vmax.f32 %v2232, 0.0
    %v2293 = vmax.f32 %v2235, 0.0
    %v2294 = vmax.f32 %v2240, 0.0
    %v2295 = vmax.f32 %v2243, 0.0
    %v2296 = vmax.f32 %v2248, 0.0
    %v2297 = vmax.f32 %v2251, 0.0
    %v2298 = vmax.f32 %v2256, 0.0
    %v2299 = vmax.f32 %v2259, 0.0
    %v2300 = vand.u32 2147483647, %v2262
    %v2301 = vand.u32 2147483647, %v2263
    %v2302 = vand.u32 2147483647, %v2264
    %v2303 = vand.u32 2147483647, %v2265
    %v2304 = vand.u32 2147483647, %v2266
    %v2305 = vand.u32 2147483647, %v2267
    %v2306 = vand.u32 2147483647, %v2268
    %v2307 = vand.u32 2147483647, %v2269
    %v2308 = vand.u32 2147483647, %v2270
    %v2309 = vand.u32 2147483647, %v2271
    %v2310 = vand.u32 2147483647, %v2272
    %v2311 = vand.u32 2147483647, %v2273
    %v2312 = vand.u32 2147483647, %v2274
    %v2313 = vand.u32 2147483647, %v2275
    %v2314 = vand.u32 2147483647, %v2276
    %v2315 = vand.u32 2147483647, %v2277
    %v2316 = vand.u32 2147483647, %v2278
    %v2317 = vand.u32 2147483647, %v2279
    %v2318 = vand.u32 2147483647, %v2280
    %v2319 = vand.u32 2147483647, %v2281
    %v2320 = vand.u32 2147483647, %v2282
    %v2321 = vand.u32 2147483647, %v2283
    %v2322 = vand.u32 2147483647, %v2284
    %v2323 = vand.u32 2147483647, %v2285
    %v2324 = vand.u32 2147483647, %v2286
    %v2325 = vand.u32 2147483647, %v2287
    %v2326 = vand.u32 2147483647, %v2288
    %v2327 = vand.u32 2147483647, %v2289
    %v2328 = vand.u32 2147483647, %v2290
    %v2329 = vand.u32 2147483647, %v2291
    %v2330 = vand.u32 2147483647, %v2292
    %v2331 = vand.u32 2147483647, %v2293
    %v2332 = vand.u32 2147483647, %v2294
    %v2333 = vand.u32 2147483647, %v2295
    %v2334 = vand.u32 2147483647, %v2296
    %v2335 = vand.u32 2147483647, %v2297
    %v2336 = vand.u32 2147483647, %v2298
    %v2337 = vand.u32 2147483647, %v2299
    %2338 = vst [vmem:[#allocation5] sm:$0xff] %v2300
    %2339 = vst [vmem:[#allocation5 + $0x8] sm:$0xff] %v2301
    %2340 = vst [vmem:[#allocation5 + $0x10] sm:$0xff] %v2302
    %2341 = vst [vmem:[#allocation5 + $0x18] sm:$0xff] %v2303
    %2342 = vst [vmem:[#allocation5 + $0x20] sm:$0xff] %v2304
    %2343 = vst [vmem:[#allocation5 + $0x28] sm:$0xff] %v2305
    %2344 = vst [vmem:[#allocation5 + $0x30] sm:$0xff] %v2306
    %2345 = vst [vmem:[#allocation5 + $0x38] sm:$0xff] %v2307
    %2346 = vst [vmem:[#allocation5 + $0x40] sm:$0xff] %v2308
    %2347 = vst [vmem:[#allocation5 + $0x48] sm:$0xff] %v2309
    %2348 = vst [vmem:[#allocation5 + $0x50] sm:$0xff] %v2310
    %2349 = vst [vmem:[#allocation5 + $0x58] sm:$0xff] %v2311
    %2350 = vst [vmem:[#allocation5 + $0x60] sm:$0xff] %v2312
    %2351 = vst [vmem:[#allocation5 + $0x68] sm:$0xff] %v2313
    %2352 = vst [vmem:[#allocation5 + $0x70] sm:$0xff] %v2314
    %2353 = vst [vmem:[#allocation5 + $0x78] sm:$0xff] %v2315
    %2354 = vst [vmem:[#allocation5 + $0x80] sm:$0xff] %v2316
    %2355 = vst [vmem:[#allocation5 + $0x88] sm:$0xff] %v2317
    %2356 = vst [vmem:[#allocation5 + $0x90] sm:$0xff] %v2318
    %2357 = vst [vmem:[#allocation5 + $0x98] sm:$0xff] %v2319
    %2358 = vst [vmem:[#allocation5 + $0xa0] sm:$0xff] %v2320
    %2359 = vst [vmem:[#allocation5 + $0xa8] sm:$0xff] %v2321
    %2360 = vst [vmem:[#allocation5 + $0xb0] sm:$0xff] %v2322
    %2361 = vst [vmem:[#allocation5 + $0xb8] sm:$0xff] %v2323
    %2362 = vst [vmem:[#allocation5 + $0xc0] sm:$0xff] %v2324
    %2363 = vst [vmem:[#allocation5 + $0xc8] sm:$0xff] %v2325
    %2364 = vst [vmem:[#allocation5 + $0xd0] sm:$0xff] %v2326
    %2365 = vst [vmem:[#allocation5 + $0xd8] sm:$0xff] %v2327
    %2366 = vst [vmem:[#allocation5 + $0xe0] sm:$0xff] %v2328
    %2367 = vst [vmem:[#allocation5 + $0xe8] sm:$0xff] %v2329
    %2368 = vst [vmem:[#allocation5 + $0xf0] sm:$0xff] %v2330
    %2369 = vst [vmem:[#allocation5 + $0xf8] sm:$0xff] %v2331
    %2370 = vst [vmem:[#allocation5 + $0x100] sm:$0xff] %v2332
    %2371 = vst [vmem:[#allocation5 + $0x108] sm:$0xff] %v2333
    %2372 = vst [vmem:[#allocation5 + $0x110] sm:$0xff] %v2334
    %2373 = vst [vmem:[#allocation5 + $0x118] sm:$0xff] %v2335
    %2374 = vst [vmem:[#allocation5 + $0x120] sm:$0xff] %v2336
    %2375 = vst [vmem:[#allocation5 + $0x128] sm:$0xff] %v2337
    // Predicated region
    $region42: #{tpu_custom_call.1} parent=1 // pred_check
      _
    $region43: #{tpu_custom_call.1} parent=1 // pred_check_branch
      %2377 = sbr.rel (0) target = $region45
    $region44: #{tpu_custom_call.1} parent=1 // pred_region
      %s2379 = ssub.s32 4864, 4864
      %2380 = vsyncadd [#allocation4], %s2379
      %s2381 = sshll.u32 [#allocation5], 4
      %s2382 = int_to_ptr.vmem [resolvable:$true] %s2381
      %2387 = dma.vmem_to_hbm [thread:$0]  %s2382, 4864, %s9, [#allocation4], 128, 128, 8
    $region45: #{tpu_custom_call.1} parent=1 // pred_fallthru
      _
    // Predicated region
    $region46: #{tpu_custom_call.1} parent=1 // pred_check
      _
    $region47: #{tpu_custom_call.1} parent=1 // pred_check_branch
      %2389 = sbr.rel (0) target = $region49
    $region48: #{tpu_custom_call.1} parent=1 // pred_region
      %2390 = dma.done [#allocation4], 4864
    $region49: #{tpu_custom_call.1} parent=1 // pred_fallthru
      _
    %2391 = vsyncpa [#allocation3], 1
    %2392 = vsyncpa [#allocation4], 1

</llo_original>
